<compile_context>
chip_gen: v6e
topology: v6e:2x2x1
jax: 0.10.0
libtpu: 0.0.40
codegen_flags: <defaults>
</compile_context>

<pallas_src>
import jax
import jax.numpy as jnp
from jax.experimental import pallas as pl
from jax.experimental.pallas import tpu as pltpu

BN_EPS = 1e-5
DROP_P = 0.5

# dot_general dimension numbers for A @ B^T (contract on the last dim of both).
_TRANS_B_DIMS = (((1,), (1,)), ((), ()))


# ---------------------------------------------------------------------------
# Fused kernel: parts avgpool (per grid step) + head (last grid step)
# ---------------------------------------------------------------------------
def _pcb_fused_kernel(f_ref, pool_ref, mask_ref, wred_ref, gamma_ref, beta_ref,
                      wcls_ref, bcls_ref, v_ref, y_ref):
    """One grid step = one batch sample; the full head runs on the last step."""
    n = pl.program_id(0)
    parts, N, _ = y_ref.shape                                 # static ints

    # ---- parts average pooling for sample n --------------------------------
    # (parts, HW) . (C, HW)^T -> (parts, C); exact AdaptiveAvgPool2d((parts,1))
    f_n = f_ref[0]                                            # (C, H*W)
    v_n = jax.lax.dot_general(pool_ref[...], f_n, _TRANS_B_DIMS,
                              preferred_element_type=jnp.float32)
    # Scatter into the part-major resident buffer: row p*N + n.  `parts` tiny
    # single-row stores per step; buys contiguous per-part slices in the head.
    for p in range(parts):
        v_ref[pl.ds(p * N + n, 1), :] = v_n[p:p + 1, :]

    # ---- head: Dropout + DimReduce(1x1 conv + BN train + ReLU) + classifiers
    @pl.when(n == pl.num_programs(0) - 1)
    def _():
        # Dropout: keep-mask already scaled by 1/(1-p) in the wrapper.
        x = v_ref[...] * mask_ref[...]                        # (parts*N, C)

        # 1x1 conv over channels == matmul; BN normalizes with biased batch
        # stats over all parts*N positions per channel (== BatchNorm2d train).
        h = jnp.dot(x, wred_ref[...], preferred_element_type=jnp.float32)
        mu = jnp.mean(h, axis=0, keepdims=True)
        var = jnp.mean((h - mu) ** 2, axis=0, keepdims=True)
        hn = (h - mu) * jax.lax.rsqrt(var + BN_EPS) * gamma_ref[...] + beta_ref[...]
        hr = jnp.maximum(hn, 0.0)                             # (parts*N, R)

        # Per-part classifiers: contiguous static row slices (part-major) so
        # each part only multiplies by its own (R, K) weight -> lane-dense
        # (parts, N, K) logits, no block-diagonal waste.
        for p in range(parts):
            rows = hr[p * N:(p + 1) * N, :]                   # (N, R)
            y_p = jnp.dot(rows, wcls_ref[p],
                          preferred_element_type=jnp.float32)
            y_ref[p] = y_p + bcls_ref[p]


# ---------------------------------------------------------------------------
# Wrapper
# ---------------------------------------------------------------------------
def pcb_forward_train(f_nchw, params, dropout_key, parts):
    """Training forward of the PCB head (loss='softmax').

    Returns ([y_i for each part], v_g (N, parts, C), scaled keep mask
    (parts*N, C) in part-major row order).
    """
    N, C, H, W = f_nchw.shape
    # TODO(synk): uneven adaptive-pool strips (H % parts != 0) not implemented.
    assert H % parts == 0
    Hp, HW = H // parts, H * W
    R = params["wred"].shape[1]
    K = params["wcls"].shape[2]

    # Free view: NCHW -> (N, C, H*W). No feature-map transpose in HBM.
    f_r = f_nchw.reshape(N, C, HW)

    # Averaging matrix: pool[p, h*W + w] = 1/(Hp*W) iff row h belongs to strip p.
    strip_of_h = jnp.arange(H) // Hp
    pool = (strip_of_h[None, :] == jnp.arange(parts)[:, None]).astype(jnp.float32)
    pool = jnp.repeat(pool, W, axis=1) / float(Hp * W)        # (parts, H*W)

    # Dropout keep-mask (part-major rows: p*N + n) with the 1/(1-p) scale folded
    # in (no in-kernel PRNG, so this also runs under the CPU interpreter).
    keep = jax.random.bernoulli(dropout_key, 1.0 - DROP_P, (parts * N, C))
    mask = keep.astype(jnp.float32) * (1.0 / (1.0 - DROP_P))

    bcls = params["bcls"].reshape(parts, 1, K)

    v_pm, y_pm = pl.pallas_call(
        _pcb_fused_kernel,
        grid=(N,),
        in_specs=[
            pl.BlockSpec((1, C, HW), lambda n: (n, 0, 0)),         # f, per sample
            pl.BlockSpec((parts, HW), lambda n: (0, 0)),           # pooling matrix
            pl.BlockSpec((parts * N, C), lambda n: (0, 0)),        # dropout mask
            pl.BlockSpec((C, R), lambda n: (0, 0)),                # conv5 weight
            pl.BlockSpec((1, R), lambda n: (0, 0)),                # BN gamma
            pl.BlockSpec((1, R), lambda n: (0, 0)),                # BN beta
            pl.BlockSpec((parts, R, K), lambda n: (0, 0, 0)),      # classifier W
            pl.BlockSpec((parts, 1, K), lambda n: (0, 0, 0)),      # classifier b
        ],
        out_specs=(
            pl.BlockSpec((parts * N, C), lambda n: (0, 0)),        # v (resident)
            pl.BlockSpec((parts, N, K), lambda n: (0, 0, 0)),      # logits
        ),
        out_shape=(
            jax.ShapeDtypeStruct((parts * N, C), jnp.float32),
            jax.ShapeDtypeStruct((parts, N, K), jnp.float32),
        ),
        compiler_params=pltpu.CompilerParams(
            # Last grid step reads v written by earlier steps -> not parallel.
            dimension_semantics=("arbitrary",)),
    )(f_r, pool, mask, params["wred"], params["gamma"], params["beta"],
      params["wcls"], bcls)

    v_g = jnp.transpose(v_pm.reshape(parts, N, C), (1, 0, 2))     # (N, parts, C)
    y_list = [y_pm[p] for p in range(parts)]
    return y_list, v_g, mask


# ---------------------------------------------------------------------------
# Deterministic parameter init mirroring PCB._init_params()
# ---------------------------------------------------------------------------
def init_params(key, C, R, K, parts):
    k1, k2 = jax.random.split(key)
    # conv5: Conv2d(C, R, 1, bias=False), kaiming_normal_(fan_out) -> std = sqrt(2/R)
    w5 = jax.random.normal(k1, (R, C), jnp.float32) * jnp.sqrt(2.0 / R)
    wred = w5.T                                     # (C, R); x @ wred == 1x1 conv
    gamma = jnp.ones((1, R), jnp.float32)           # BatchNorm2d weight = 1
    beta = jnp.zeros((1, R), jnp.float32)           # BatchNorm2d bias   = 0
    # classifiers: `parts` x Linear(R, K); weight ~ N(0, 0.01), bias = 0
    wcls = jax.random.normal(k2, (parts, R, K), jnp.float32) * 0.01
    bcls = jnp.zeros((parts, K), jnp.float32)
    return dict(wred=wred, gamma=gamma, beta=beta, wcls=wcls, bcls=bcls)


if __name__ == "__main__":
    key = jax.random.PRNGKey(0)
    kf, kp, kd = jax.random.split(key, 3)

    # Small synthetic trunk output (NCHW). 512 = 512 * block.expansion (expansion=1).
    N, C, H, W = 2, 512, 12, 4
    PARTS, R, K = 6, 256, 128                       # parts, reduced_dim, num_classes

    f = jax.random.normal(kf, (N, C, H, W), jnp.float32)
    params = init_params(kp, C, R, K, PARTS)

    y_list, v_g, mask = pcb_forward_train(f, params, kd, PARTS)
    jax.block_until_ready(y_list)

    # ---- correctness checks against a pure-JAX reference ----
    Hp = H // PARTS
    v_g_ref = jnp.transpose(
        jnp.mean(f.reshape(N, C, PARTS, Hp, W), axis=(3, 4)), (0, 2, 1))  # (N, parts, C)
    assert jnp.allclose(v_g, v_g_ref, rtol=1e-4, atol=1e-4)

    # Head reference in the same part-major row order used by the kernel/mask.
    x = jnp.transpose(v_g_ref, (1, 0, 2)).reshape(PARTS * N, C) * mask
    h = x @ params["wred"]
    mu = h.mean(0, keepdims=True)
    var = ((h - mu) ** 2).mean(0, keepdims=True)
    hn = (h - mu) / jnp.sqrt(var + BN_EPS) * params["gamma"] + params["beta"]
    hr = jnp.maximum(hn, 0.0).reshape(PARTS, N, R)
    for p in range(PARTS):
        yp_ref = hr[p] @ params["wcls"][p] + params["bcls"][p]
        assert jnp.allclose(y_list[p], yp_ref, rtol=1e-3, atol=1e-3), p

    print("KERNEL_OK")
</pallas_src>

<mosaic_0001>
module attributes {stable_mosaic.version = 11 : i64} {
  func.func @_pcb_fused_kernel(%arg0: i32, %arg1: memref<1x512x48xf32, #tpu.memory_space<vmem>>, %arg2: memref<6x48xf32, #tpu.memory_space<vmem>>, %arg3: memref<12x512xf32, #tpu.memory_space<vmem>>, %arg4: memref<512x256xf32, #tpu.memory_space<vmem>>, %arg5: memref<1x256xf32, #tpu.memory_space<vmem>>, %arg6: memref<1x256xf32, #tpu.memory_space<vmem>>, %arg7: memref<6x256x128xf32, #tpu.memory_space<vmem>>, %arg8: memref<6x1x128xf32, #tpu.memory_space<vmem>>, %arg9: memref<12x512xf32, #tpu.memory_space<vmem>>, %arg10: memref<6x2x128xf32, #tpu.memory_space<vmem>>) attributes {dimension_semantics = [#tpu.dimension_semantics<arbitrary>], iteration_bounds = array<i64: 2>, scalar_prefetch = 0 : i64, scratch_operands = 0 : i64, tpu.core_type = #tpu.core_type<tc>, window_params = [{transform_indices = @transform_0, window_bounds = array<i64: 1, 512, 48>}, {pipeline_mode = #tpu.pipeline_mode<synchronous>, transform_indices = @transform_1, window_bounds = array<i64: 6, 48>}, {pipeline_mode = #tpu.pipeline_mode<synchronous>, transform_indices = @transform_2, window_bounds = array<i64: 12, 512>}, {pipeline_mode = #tpu.pipeline_mode<synchronous>, transform_indices = @transform_3, window_bounds = array<i64: 512, 256>}, {pipeline_mode = #tpu.pipeline_mode<synchronous>, transform_indices = @transform_4, window_bounds = array<i64: 1, 256>}, {pipeline_mode = #tpu.pipeline_mode<synchronous>, transform_indices = @transform_5, window_bounds = array<i64: 1, 256>}, {pipeline_mode = #tpu.pipeline_mode<synchronous>, transform_indices = @transform_6, window_bounds = array<i64: 6, 256, 128>}, {pipeline_mode = #tpu.pipeline_mode<synchronous>, transform_indices = @transform_7, window_bounds = array<i64: 6, 1, 128>}, {pipeline_mode = #tpu.pipeline_mode<synchronous>, transform_indices = @transform_8, window_bounds = array<i64: 12, 512>}, {pipeline_mode = #tpu.pipeline_mode<synchronous>, transform_indices = @transform_9, window_bounds = array<i64: 6, 2, 128>}]} {
    %c0 = arith.constant 0 : index
    %c0_0 = arith.constant 0 : index
    %c0_1 = arith.constant 0 : index
    %0 = vector.load %arg1[%c0, %c0_0, %c0_1] : memref<1x512x48xf32, #tpu.memory_space<vmem>>, vector<1x512x48xf32>
    %1 = vector.shape_cast %0 : vector<1x512x48xf32> to vector<512x48xf32>
    %c0_2 = arith.constant 0 : index
    %c0_3 = arith.constant 0 : index
    %2 = vector.load %arg2[%c0_2, %c0_3] : memref<6x48xf32, #tpu.memory_space<vmem>>, vector<6x48xf32>
    %cst = arith.constant dense<0.000000e+00> : vector<6x512xf32>
    %3 = tpu.matmul %2, %1, %cst {dimension_numbers = #tpu.dot_dimension_numbers<[1], [1], [0], [0], [0, 0, 1, 0], [], []>} : vector<6x48xf32>, vector<512x48xf32>, vector<6x512xf32> -> vector<6x512xf32>
    %4 = vector.extract_strided_slice %3 {offsets = [0, 0], sizes = [1, 512], strides = [1, 1]} : vector<6x512xf32> to vector<1x512xf32>
    %c0_i32 = arith.constant 0 : i32
    %5 = arith.addi %c0_i32, %arg0 : i32
    %6 = arith.index_cast %5 : i32 to index
    %c0_4 = arith.constant 0 : index
    %7 = vector.load %arg9[%6, %c0_4] : memref<12x512xf32, #tpu.memory_space<vmem>>, vector<1x512xf32>
    tpu.vector_store %arg9[%6, %c0_4], %4 {strides = array<i32>} : memref<12x512xf32, #tpu.memory_space<vmem>>, vector<1x512xf32>,
    %8 = vector.extract_strided_slice %3 {offsets = [1, 0], sizes = [1, 512], strides = [1, 1]} : vector<6x512xf32> to vector<1x512xf32>
    %c2_i32 = arith.constant 2 : i32
    %9 = arith.addi %c2_i32, %arg0 : i32
    %10 = arith.index_cast %9 : i32 to index
    %c0_5 = arith.constant 0 : index
    %11 = vector.load %arg9[%10, %c0_5] : memref<12x512xf32, #tpu.memory_space<vmem>>, vector<1x512xf32>
    tpu.vector_store %arg9[%10, %c0_5], %8 {strides = array<i32>} : memref<12x512xf32, #tpu.memory_space<vmem>>, vector<1x512xf32>,
    %12 = vector.extract_strided_slice %3 {offsets = [2, 0], sizes = [1, 512], strides = [1, 1]} : vector<6x512xf32> to vector<1x512xf32>
    %c4_i32 = arith.constant 4 : i32
    %13 = arith.addi %c4_i32, %arg0 : i32
    %14 = arith.index_cast %13 : i32 to index
    %c0_6 = arith.constant 0 : index
    %15 = vector.load %arg9[%14, %c0_6] : memref<12x512xf32, #tpu.memory_space<vmem>>, vector<1x512xf32>
    tpu.vector_store %arg9[%14, %c0_6], %12 {strides = array<i32>} : memref<12x512xf32, #tpu.memory_space<vmem>>, vector<1x512xf32>,
    %16 = vector.extract_strided_slice %3 {offsets = [3, 0], sizes = [1, 512], strides = [1, 1]} : vector<6x512xf32> to vector<1x512xf32>
    %c6_i32 = arith.constant 6 : i32
    %17 = arith.addi %c6_i32, %arg0 : i32
    %18 = arith.index_cast %17 : i32 to index
    %c0_7 = arith.constant 0 : index
    %19 = vector.load %arg9[%18, %c0_7] : memref<12x512xf32, #tpu.memory_space<vmem>>, vector<1x512xf32>
    tpu.vector_store %arg9[%18, %c0_7], %16 {strides = array<i32>} : memref<12x512xf32, #tpu.memory_space<vmem>>, vector<1x512xf32>,
    %20 = vector.extract_strided_slice %3 {offsets = [4, 0], sizes = [1, 512], strides = [1, 1]} : vector<6x512xf32> to vector<1x512xf32>
    %c8_i32 = arith.constant 8 : i32
    %21 = arith.addi %c8_i32, %arg0 : i32
    %22 = arith.index_cast %21 : i32 to index
    %c0_8 = arith.constant 0 : index
    %23 = vector.load %arg9[%22, %c0_8] : memref<12x512xf32, #tpu.memory_space<vmem>>, vector<1x512xf32>
    tpu.vector_store %arg9[%22, %c0_8], %20 {strides = array<i32>} : memref<12x512xf32, #tpu.memory_space<vmem>>, vector<1x512xf32>,
    %24 = vector.extract_strided_slice %3 {offsets = [5, 0], sizes = [1, 512], strides = [1, 1]} : vector<6x512xf32> to vector<1x512xf32>
    %c10_i32 = arith.constant 10 : i32
    %25 = arith.addi %c10_i32, %arg0 : i32
    %26 = arith.index_cast %25 : i32 to index
    %c0_9 = arith.constant 0 : index
    %27 = vector.load %arg9[%26, %c0_9] : memref<12x512xf32, #tpu.memory_space<vmem>>, vector<1x512xf32>
    tpu.vector_store %arg9[%26, %c0_9], %24 {strides = array<i32>} : memref<12x512xf32, #tpu.memory_space<vmem>>, vector<1x512xf32>,
    %c1_i32 = arith.constant 1 : i32
    %28 = arith.cmpi eq, %arg0, %c1_i32 : i32
    %29 = arith.extui %28 : i1 to i32
    %c0_i32_10 = arith.constant 0 : i32
    %30 = arith.cmpi ne, %29, %c0_i32_10 : i32
    scf.if %30 {
      %c0_11 = arith.constant 0 : index
      %c0_12 = arith.constant 0 : index
      %31 = vector.load %arg9[%c0_11, %c0_12] : memref<12x512xf32, #tpu.memory_space<vmem>>, vector<12x512xf32>
      %c0_13 = arith.constant 0 : index
      %c0_14 = arith.constant 0 : index
      %32 = vector.load %arg3[%c0_13, %c0_14] : memref<12x512xf32, #tpu.memory_space<vmem>>, vector<12x512xf32>
      %33 = arith.mulf %31, %32 : vector<12x512xf32>
      %c0_15 = arith.constant 0 : index
      %c0_16 = arith.constant 0 : index
      %34 = vector.load %arg4[%c0_15, %c0_16] : memref<512x256xf32, #tpu.memory_space<vmem>>, vector<512x256xf32>
      %cst_17 = arith.constant dense<0.000000e+00> : vector<12x256xf32>
      %35 = tpu.matmul %33, %34, %cst_17 {dimension_numbers = #tpu.dot_dimension_numbers<[1], [0], [0], [1], [0, 0, 1, 1], [], []>} : vector<12x512xf32>, vector<512x256xf32>, vector<12x256xf32> -> vector<12x256xf32>
      %cst_18 = arith.constant dense<0.000000e+00> : vector<256xf32>
      %36 = vector.multi_reduction <add>, %35, %cst_18 [0] : vector<12x256xf32> to vector<256xf32>
      %37 = vector.shape_cast %36 : vector<256xf32> to vector<1x256xf32>
      %cst_19 = arith.constant 1.200000e+01 : f32
      %38 = vector.broadcast %cst_19 : f32 to vector<1x256xf32>
      %39 = arith.divf %37, %38 : vector<1x256xf32>
      %40 = vector.broadcast %39 : vector<1x256xf32> to vector<12x256xf32>
      %41 = arith.subf %35, %40 : vector<12x256xf32>
      %42 = arith.mulf %41, %41 : vector<12x256xf32>
      %cst_20 = arith.constant dense<0.000000e+00> : vector<256xf32>
      %43 = vector.multi_reduction <add>, %42, %cst_20 [0] : vector<12x256xf32> to vector<256xf32>
      %44 = vector.shape_cast %43 : vector<256xf32> to vector<1x256xf32>
      %cst_21 = arith.constant 1.200000e+01 : f32
      %45 = vector.broadcast %cst_21 : f32 to vector<1x256xf32>
      %46 = arith.divf %44, %45 : vector<1x256xf32>
      %47 = vector.broadcast %39 : vector<1x256xf32> to vector<12x256xf32>
      %48 = arith.subf %35, %47 : vector<12x256xf32>
      %cst_22 = arith.constant 9.99999974E-6 : f32
      %49 = vector.broadcast %cst_22 : f32 to vector<1x256xf32>
      %50 = arith.addf %46, %49 : vector<1x256xf32>
      %51 = math.rsqrt %50 : vector<1x256xf32>
      %52 = vector.broadcast %51 : vector<1x256xf32> to vector<12x256xf32>
      %53 = arith.mulf %48, %52 : vector<12x256xf32>
      %c0_23 = arith.constant 0 : index
      %c0_24 = arith.constant 0 : index
      %54 = vector.load %arg5[%c0_23, %c0_24] : memref<1x256xf32, #tpu.memory_space<vmem>>, vector<1x256xf32>
      %55 = vector.broadcast %54 : vector<1x256xf32> to vector<12x256xf32>
      %56 = arith.mulf %53, %55 : vector<12x256xf32>
      %c0_25 = arith.constant 0 : index
      %c0_26 = arith.constant 0 : index
      %57 = vector.load %arg6[%c0_25, %c0_26] : memref<1x256xf32, #tpu.memory_space<vmem>>, vector<1x256xf32>
      %58 = vector.broadcast %57 : vector<1x256xf32> to vector<12x256xf32>
      %59 = arith.addf %56, %58 : vector<12x256xf32>
      %cst_27 = arith.constant 0.000000e+00 : f32
      %60 = vector.broadcast %cst_27 : f32 to vector<12x256xf32>
      %61 = arith.maximumf %59, %60 : vector<12x256xf32>
      %62 = vector.extract_strided_slice %61 {offsets = [0, 0], sizes = [2, 256], strides = [1, 1]} : vector<12x256xf32> to vector<2x256xf32>
      %c0_28 = arith.constant 0 : index
      %c0_29 = arith.constant 0 : index
      %c0_30 = arith.constant 0 : index
      %63 = vector.load %arg7[%c0_28, %c0_29, %c0_30] : memref<6x256x128xf32, #tpu.memory_space<vmem>>, vector<1x256x128xf32>
      %64 = vector.shape_cast %63 : vector<1x256x128xf32> to vector<256x128xf32>
      %cst_31 = arith.constant dense<0.000000e+00> : vector<2x128xf32>
      %65 = tpu.matmul %62, %64, %cst_31 {dimension_numbers = #tpu.dot_dimension_numbers<[1], [0], [0], [1], [0, 0, 1, 1], [], []>} : vector<2x256xf32>, vector<256x128xf32>, vector<2x128xf32> -> vector<2x128xf32>
      %c0_32 = arith.constant 0 : index
      %c0_33 = arith.constant 0 : index
      %c0_34 = arith.constant 0 : index
      %66 = vector.load %arg8[%c0_32, %c0_33, %c0_34] : memref<6x1x128xf32, #tpu.memory_space<vmem>>, vector<1x1x128xf32>
      %67 = vector.shape_cast %66 : vector<1x1x128xf32> to vector<1x128xf32>
      %68 = vector.broadcast %67 : vector<1x128xf32> to vector<2x128xf32>
      %69 = arith.addf %65, %68 : vector<2x128xf32>
      %c0_35 = arith.constant 0 : index
      %c0_36 = arith.constant 0 : index
      %c0_37 = arith.constant 0 : index
      %70 = vector.load %arg10[%c0_35, %c0_36, %c0_37] : memref<6x2x128xf32, #tpu.memory_space<vmem>>, vector<1x2x128xf32>
      %71 = vector.shape_cast %70 : vector<1x2x128xf32> to vector<2x128xf32>
      %72 = vector.shape_cast %69 : vector<2x128xf32> to vector<1x2x128xf32>
      tpu.vector_store %arg10[%c0_35, %c0_36, %c0_37], %72 {strides = array<i32>} : memref<6x2x128xf32, #tpu.memory_space<vmem>>, vector<1x2x128xf32>,
      %73 = vector.extract_strided_slice %61 {offsets = [2, 0], sizes = [2, 256], strides = [1, 1]} : vector<12x256xf32> to vector<2x256xf32>
      %c1 = arith.constant 1 : index
      %c0_38 = arith.constant 0 : index
      %c0_39 = arith.constant 0 : index
      %74 = vector.load %arg7[%c1, %c0_38, %c0_39] : memref<6x256x128xf32, #tpu.memory_space<vmem>>, vector<1x256x128xf32>
      %75 = vector.shape_cast %74 : vector<1x256x128xf32> to vector<256x128xf32>
      %cst_40 = arith.constant dense<0.000000e+00> : vector<2x128xf32>
      %76 = tpu.matmul %73, %75, %cst_40 {dimension_numbers = #tpu.dot_dimension_numbers<[1], [0], [0], [1], [0, 0, 1, 1], [], []>} : vector<2x256xf32>, vector<256x128xf32>, vector<2x128xf32> -> vector<2x128xf32>
      %c1_41 = arith.constant 1 : index
      %c0_42 = arith.constant 0 : index
      %c0_43 = arith.constant 0 : index
      %77 = vector.load %arg8[%c1_41, %c0_42, %c0_43] : memref<6x1x128xf32, #tpu.memory_space<vmem>>, vector<1x1x128xf32>
      %78 = vector.shape_cast %77 : vector<1x1x128xf32> to vector<1x128xf32>
      %79 = vector.broadcast %78 : vector<1x128xf32> to vector<2x128xf32>
      %80 = arith.addf %76, %79 : vector<2x128xf32>
      %c1_44 = arith.constant 1 : index
      %c0_45 = arith.constant 0 : index
      %c0_46 = arith.constant 0 : index
      %81 = vector.load %arg10[%c1_44, %c0_45, %c0_46] : memref<6x2x128xf32, #tpu.memory_space<vmem>>, vector<1x2x128xf32>
      %82 = vector.shape_cast %81 : vector<1x2x128xf32> to vector<2x128xf32>
      %83 = vector.shape_cast %80 : vector<2x128xf32> to vector<1x2x128xf32>
      tpu.vector_store %arg10[%c1_44, %c0_45, %c0_46], %83 {strides = array<i32>} : memref<6x2x128xf32, #tpu.memory_space<vmem>>, vector<1x2x128xf32>,
      %84 = vector.extract_strided_slice %61 {offsets = [4, 0], sizes = [2, 256], strides = [1, 1]} : vector<12x256xf32> to vector<2x256xf32>
      %c2 = arith.constant 2 : index
      %c0_47 = arith.constant 0 : index
      %c0_48 = arith.constant 0 : index
      %85 = vector.load %arg7[%c2, %c0_47, %c0_48] : memref<6x256x128xf32, #tpu.memory_space<vmem>>, vector<1x256x128xf32>
      %86 = vector.shape_cast %85 : vector<1x256x128xf32> to vector<256x128xf32>
      %cst_49 = arith.constant dense<0.000000e+00> : vector<2x128xf32>
      %87 = tpu.matmul %84, %86, %cst_49 {dimension_numbers = #tpu.dot_dimension_numbers<[1], [0], [0], [1], [0, 0, 1, 1], [], []>} : vector<2x256xf32>, vector<256x128xf32>, vector<2x128xf32> -> vector<2x128xf32>
      %c2_50 = arith.constant 2 : index
      %c0_51 = arith.constant 0 : index
      %c0_52 = arith.constant 0 : index
      %88 = vector.load %arg8[%c2_50, %c0_51, %c0_52] : memref<6x1x128xf32, #tpu.memory_space<vmem>>, vector<1x1x128xf32>
      %89 = vector.shape_cast %88 : vector<1x1x128xf32> to vector<1x128xf32>
      %90 = vector.broadcast %89 : vector<1x128xf32> to vector<2x128xf32>
      %91 = arith.addf %87, %90 : vector<2x128xf32>
      %c2_53 = arith.constant 2 : index
      %c0_54 = arith.constant 0 : index
      %c0_55 = arith.constant 0 : index
      %92 = vector.load %arg10[%c2_53, %c0_54, %c0_55] : memref<6x2x128xf32, #tpu.memory_space<vmem>>, vector<1x2x128xf32>
      %93 = vector.shape_cast %92 : vector<1x2x128xf32> to vector<2x128xf32>
      %94 = vector.shape_cast %91 : vector<2x128xf32> to vector<1x2x128xf32>
      tpu.vector_store %arg10[%c2_53, %c0_54, %c0_55], %94 {strides = array<i32>} : memref<6x2x128xf32, #tpu.memory_space<vmem>>, vector<1x2x128xf32>,
      %95 = vector.extract_strided_slice %61 {offsets = [6, 0], sizes = [2, 256], strides = [1, 1]} : vector<12x256xf32> to vector<2x256xf32>
      %c3 = arith.constant 3 : index
      %c0_56 = arith.constant 0 : index
      %c0_57 = arith.constant 0 : index
      %96 = vector.load %arg7[%c3, %c0_56, %c0_57] : memref<6x256x128xf32, #tpu.memory_space<vmem>>, vector<1x256x128xf32>
      %97 = vector.shape_cast %96 : vector<1x256x128xf32> to vector<256x128xf32>
      %cst_58 = arith.constant dense<0.000000e+00> : vector<2x128xf32>
      %98 = tpu.matmul %95, %97, %cst_58 {dimension_numbers = #tpu.dot_dimension_numbers<[1], [0], [0], [1], [0, 0, 1, 1], [], []>} : vector<2x256xf32>, vector<256x128xf32>, vector<2x128xf32> -> vector<2x128xf32>
      %c3_59 = arith.constant 3 : index
      %c0_60 = arith.constant 0 : index
      %c0_61 = arith.constant 0 : index
      %99 = vector.load %arg8[%c3_59, %c0_60, %c0_61] : memref<6x1x128xf32, #tpu.memory_space<vmem>>, vector<1x1x128xf32>
      %100 = vector.shape_cast %99 : vector<1x1x128xf32> to vector<1x128xf32>
      %101 = vector.broadcast %100 : vector<1x128xf32> to vector<2x128xf32>
      %102 = arith.addf %98, %101 : vector<2x128xf32>
      %c3_62 = arith.constant 3 : index
      %c0_63 = arith.constant 0 : index
      %c0_64 = arith.constant 0 : index
      %103 = vector.load %arg10[%c3_62, %c0_63, %c0_64] : memref<6x2x128xf32, #tpu.memory_space<vmem>>, vector<1x2x128xf32>
      %104 = vector.shape_cast %103 : vector<1x2x128xf32> to vector<2x128xf32>
      %105 = vector.shape_cast %102 : vector<2x128xf32> to vector<1x2x128xf32>
      tpu.vector_store %arg10[%c3_62, %c0_63, %c0_64], %105 {strides = array<i32>} : memref<6x2x128xf32, #tpu.memory_space<vmem>>, vector<1x2x128xf32>,
      %106 = vector.extract_strided_slice %61 {offsets = [8, 0], sizes = [2, 256], strides = [1, 1]} : vector<12x256xf32> to vector<2x256xf32>
      %c4 = arith.constant 4 : index
      %c0_65 = arith.constant 0 : index
      %c0_66 = arith.constant 0 : index
      %107 = vector.load %arg7[%c4, %c0_65, %c0_66] : memref<6x256x128xf32, #tpu.memory_space<vmem>>, vector<1x256x128xf32>
      %108 = vector.shape_cast %107 : vector<1x256x128xf32> to vector<256x128xf32>
      %cst_67 = arith.constant dense<0.000000e+00> : vector<2x128xf32>
      %109 = tpu.matmul %106, %108, %cst_67 {dimension_numbers = #tpu.dot_dimension_numbers<[1], [0], [0], [1], [0, 0, 1, 1], [], []>} : vector<2x256xf32>, vector<256x128xf32>, vector<2x128xf32> -> vector<2x128xf32>
      %c4_68 = arith.constant 4 : index
      %c0_69 = arith.constant 0 : index
      %c0_70 = arith.constant 0 : index
      %110 = vector.load %arg8[%c4_68, %c0_69, %c0_70] : memref<6x1x128xf32, #tpu.memory_space<vmem>>, vector<1x1x128xf32>
      %111 = vector.shape_cast %110 : vector<1x1x128xf32> to vector<1x128xf32>
      %112 = vector.broadcast %111 : vector<1x128xf32> to vector<2x128xf32>
      %113 = arith.addf %109, %112 : vector<2x128xf32>
      %c4_71 = arith.constant 4 : index
      %c0_72 = arith.constant 0 : index
      %c0_73 = arith.constant 0 : index
      %114 = vector.load %arg10[%c4_71, %c0_72, %c0_73] : memref<6x2x128xf32, #tpu.memory_space<vmem>>, vector<1x2x128xf32>
      %115 = vector.shape_cast %114 : vector<1x2x128xf32> to vector<2x128xf32>
      %116 = vector.shape_cast %113 : vector<2x128xf32> to vector<1x2x128xf32>
      tpu.vector_store %arg10[%c4_71, %c0_72, %c0_73], %116 {strides = array<i32>} : memref<6x2x128xf32, #tpu.memory_space<vmem>>, vector<1x2x128xf32>,
      %117 = vector.extract_strided_slice %61 {offsets = [10, 0], sizes = [2, 256], strides = [1, 1]} : vector<12x256xf32> to vector<2x256xf32>
      %c5 = arith.constant 5 : index
      %c0_74 = arith.constant 0 : index
      %c0_75 = arith.constant 0 : index
      %118 = vector.load %arg7[%c5, %c0_74, %c0_75] : memref<6x256x128xf32, #tpu.memory_space<vmem>>, vector<1x256x128xf32>
      %119 = vector.shape_cast %118 : vector<1x256x128xf32> to vector<256x128xf32>
      %cst_76 = arith.constant dense<0.000000e+00> : vector<2x128xf32>
      %120 = tpu.matmul %117, %119, %cst_76 {dimension_numbers = #tpu.dot_dimension_numbers<[1], [0], [0], [1], [0, 0, 1, 1], [], []>} : vector<2x256xf32>, vector<256x128xf32>, vector<2x128xf32> -> vector<2x128xf32>
      %c5_77 = arith.constant 5 : index
      %c0_78 = arith.constant 0 : index
      %c0_79 = arith.constant 0 : index
      %121 = vector.load %arg8[%c5_77, %c0_78, %c0_79] : memref<6x1x128xf32, #tpu.memory_space<vmem>>, vector<1x1x128xf32>
      %122 = vector.shape_cast %121 : vector<1x1x128xf32> to vector<1x128xf32>
      %123 = vector.broadcast %122 : vector<1x128xf32> to vector<2x128xf32>
      %124 = arith.addf %120, %123 : vector<2x128xf32>
      %c5_80 = arith.constant 5 : index
      %c0_81 = arith.constant 0 : index
      %c0_82 = arith.constant 0 : index
      %125 = vector.load %arg10[%c5_80, %c0_81, %c0_82] : memref<6x2x128xf32, #tpu.memory_space<vmem>>, vector<1x2x128xf32>
      %126 = vector.shape_cast %125 : vector<1x2x128xf32> to vector<2x128xf32>
      %127 = vector.shape_cast %124 : vector<2x128xf32> to vector<1x2x128xf32>
      tpu.vector_store %arg10[%c5_80, %c0_81, %c0_82], %127 {strides = array<i32>} : memref<6x2x128xf32, #tpu.memory_space<vmem>>, vector<1x2x128xf32>,
    } else {
    }
    return
  }
  func.func @transform_0(%arg0: i32) -> (i32, i32, i32) {
    %c0_i32 = arith.constant 0 : i32
    %c0_i32_0 = arith.constant 0 : i32
    %c0_i32_1 = arith.constant 0 : i32
    return %arg0, %c0_i32, %c0_i32_0 : i32, i32, i32
  }
  func.func @transform_1(%arg0: i32) -> (i32, i32) {
    %c0_i32 = arith.constant 0 : i32
    %c0_i32_0 = arith.constant 0 : i32
    %c0_i32_1 = arith.constant 0 : i32
    return %c0_i32, %c0_i32_0 : i32, i32
  }
  func.func @transform_2(%arg0: i32) -> (i32, i32) {
    %c0_i32 = arith.constant 0 : i32
    %c0_i32_0 = arith.constant 0 : i32
    %c0_i32_1 = arith.constant 0 : i32
    return %c0_i32, %c0_i32_0 : i32, i32
  }
  func.func @transform_3(%arg0: i32) -> (i32, i32) {
    %c0_i32 = arith.constant 0 : i32
    %c0_i32_0 = arith.constant 0 : i32
    %c0_i32_1 = arith.constant 0 : i32
    return %c0_i32, %c0_i32_0 : i32, i32
  }
  func.func @transform_4(%arg0: i32) -> (i32, i32) {
    %c0_i32 = arith.constant 0 : i32
    %c0_i32_0 = arith.constant 0 : i32
    %c0_i32_1 = arith.constant 0 : i32
    return %c0_i32, %c0_i32_0 : i32, i32
  }
  func.func @transform_5(%arg0: i32) -> (i32, i32) {
    %c0_i32 = arith.constant 0 : i32
    %c0_i32_0 = arith.constant 0 : i32
    %c0_i32_1 = arith.constant 0 : i32
    return %c0_i32, %c0_i32_0 : i32, i32
  }
  func.func @transform_6(%arg0: i32) -> (i32, i32, i32) {
    %c0_i32 = arith.constant 0 : i32
    %c0_i32_0 = arith.constant 0 : i32
    %c0_i32_1 = arith.constant 0 : i32
    %c0_i32_2 = arith.constant 0 : i32
    return %c0_i32, %c0_i32_0, %c0_i32_1 : i32, i32, i32
  }
  func.func @transform_7(%arg0: i32) -> (i32, i32, i32) {
    %c0_i32 = arith.constant 0 : i32
    %c0_i32_0 = arith.constant 0 : i32
    %c0_i32_1 = arith.constant 0 : i32
    %c0_i32_2 = arith.constant 0 : i32
    return %c0_i32, %c0_i32_0, %c0_i32_1 : i32, i32, i32
  }
  func.func @transform_8(%arg0: i32) -> (i32, i32) {
    %c0_i32 = arith.constant 0 : i32
    %c0_i32_0 = arith.constant 0 : i32
    %c0_i32_1 = arith.constant 0 : i32
    return %c0_i32, %c0_i32_0 : i32, i32
  }
  func.func @transform_9(%arg0: i32) -> (i32, i32, i32) {
    %c0_i32 = arith.constant 0 : i32
    %c0_i32_0 = arith.constant 0 : i32
    %c0_i32_1 = arith.constant 0 : i32
    %c0_i32_2 = arith.constant 0 : i32
    return %c0_i32, %c0_i32_0, %c0_i32_1 : i32, i32, i32
  }
}

</mosaic_0001>

<llo_original>
// kernel: tpu_custom_call.1
$region0: #{tpu_custom_call.1}
  #allocation0 [shape = 'u32[]', space=smem, size = 0x4, offset = 0x4, fixed_abs, tag = 'smem constant byte address 0x4 - core index']
  #allocation1 [shape = 'u32[144,128]{1,0:T(1,128)}', space=vmem, size = 0x12000, scoped, tag = 'internal scratch']
  %s0 = inlined_call_operand.vmem [shape: f32[2,512,48], index: 0, kind: input, shape index: {}]
  %s1 = inlined_call_operand.vmem [shape: f32[6,48], index: 1, kind: input, shape index: {}]
  %s2 = inlined_call_operand.vmem [shape: f32[12,512], index: 2, kind: input, shape index: {}]
  %s3 = inlined_call_operand.vmem [shape: f32[512,256], index: 3, kind: input, shape index: {}]
  %s4 = inlined_call_operand.vmem [shape: f32[1,256], index: 4, kind: input, shape index: {}]
  %s5 = inlined_call_operand.vmem [shape: f32[1,256], index: 5, kind: input, shape index: {}]
  %s6 = inlined_call_operand.hbm [shape: f32[6,256,128], index: 6, kind: input, shape index: {}]
  %s7 = inlined_call_operand.vmem [shape: f32[6,1,128], index: 7, kind: input, shape index: {}]
  %s8 = inlined_call_operand.hbm [shape: f32[12,512], index: 8, kind: output, shape index: {0}]
  %s9 = inlined_call_operand.hbm [shape: f32[6,2,128], index: 9, kind: output, shape index: {1}]
  %10 = xla_tuple %s8, %s9
  %s11 = sld [smem:[#allocation0]]
  $region81: #{tpu_custom_call.1} parent=0
    _
  %s13 = ssub.s32 1, %s11
  %s14 = scalar_select 0, %s13, %s11
  $region1: #{tpu_custom_call.1} parent=0
    #allocation2 [shape = 'u8[786432]{0}', space=vmem, size = 0xc0000, scoped, tag = 'input window, operand 6, single buffered']
    #allocation3 [shape = 's32[2]{0}', space=sflag, size = 0x8, scoped, tag = 'scoped memory for tpu_custom_call.1']
    #allocation4 [shape = 's32[2]{0}', space=sflag, size = 0x8, scoped, tag = 'scoped memory for tpu_custom_call.1']
    #allocation5 [shape = 'u8[32768]{0}', space=vmem, size = 0x8000, scoped, tag = 'output window, operand 0, single buffered']
    #allocation6 [shape = 'u8[6144]{0}', space=vmem, size = 0x1800, scoped, tag = 'output window, operand 1, single buffered']
    #allocation7 [shape = 's32[1]{0}', space=sflag, size = 0x4, scoped, tag = 'scoped memory for tpu_custom_call.1']
    %15 = vsyncpa [#allocation3], 0
    %16 = vsyncpa [#allocation4], 0
    %17 = vsyncpa [#allocation7], 0
    loop: start=0, step=1, limit=4
    $region2: #{tpu_custom_call.1} parent=1 // loop_pre_header
      _
    $region3: #{tpu_custom_call.1} parent=1 // loop_header
      %s19 = sphi 0, %s23
      %p20 = scmp.ge.s32.totalorder %s19, 4
      %s29 = sphi 0, %s31
      %s32 = sphi 0, %s29
      %s33 = sphi 0, %s32
      %s49 = sphi 0, %s33
      %s53 = sphi 0, %s53
      %s55 = sphi 0, %s53
      %s56 = sphi 0, %s55
      %s70 = sphi 0, %s56
      %s74 = sphi 0, %s74
      %s76 = sphi 0, %s74
      %s77 = sphi 0, %s76
      %s91 = sphi 0, %s77
      %s95 = sphi 0, %s95
      %s97 = sphi 0, %s95
      %s98 = sphi 0, %s97
      %s112 = sphi 0, %s98
      %s116 = sphi 0, %s116
      %s118 = sphi 0, %s116
      %s119 = sphi 0, %s118
      %s133 = sphi 0, %s119
      %s137 = sphi 0, %s137
      %s139 = sphi 0, %s137
      %s140 = sphi 0, %s139
      %s154 = sphi 0, %s140
      %s158 = sphi 0, %s158
      %s160 = sphi 0, %s158
      %s161 = sphi 0, %s160
      %s175 = sphi 0, %s161
      %s179 = sphi 0, %s179
      %s181 = sphi 0, %s179
      %s182 = sphi 0, %s181
      %s196 = sphi 0, %s182
      %s200 = sphi 0, %s200
      %s202 = sphi 0, %s200
      %s203 = sphi 0, %s202
      %s217 = sphi 0, %s203
      %s221 = sphi 0, %s221
      %s223 = sphi 0, %s221
      %s224 = sphi 0, %s223
      %s238 = sphi 0, %s224
    $region4: #{tpu_custom_call.1} parent=1 // loop_header_branch
      %22 = sbr.rel (%p20) target = $region8
    $region5: #{tpu_custom_call.1} parent=1 // loop_body
      %s24 = ssub.s32 %s19, 1
      %s25 = ssub.s32 %s19, 2
      %s26 = sadd.s32 %s19, 1
      %s27 = ssub.s32 %s19, %s26
      %p28 = scmp.eq.s32.totalorder %s27, 0
      %s30 = sadd.s32 %s29, 1
      %s31 = scalar_select %p28, %s29, %s30
      %p34 = pneg %p28
      %p35 = scmp.eq.s32.totalorder %s19, 1
      %p36 = por %p34, %p35
      %p37 = scmp.ne.s32.totalorder %s29, %s32
      %p38 = scmp.eq.s32.totalorder %s19, 0
      %p39 = por %p37, %p38
      %p40 = scmp.ne.s32.totalorder %s29, %s32
      %p41 = scmp.eq.s32.totalorder %s24, 1
      %p42 = por %p40, %p41
      %p43 = scmp.ne.s32.totalorder %s32, %s33
      %p44 = scmp.eq.s32.totalorder %s24, 0
      %p45 = por %p43, %p44
      %p46 = scmp.ne.s32.totalorder %s32, %s33
      %p47 = scmp.eq.s32.totalorder %s25, 1
      %p48 = por %p46, %p47
      %p50 = scmp.ne.s32.totalorder %s33, %s49
      %p51 = scmp.eq.s32.totalorder %s25, 0
      %p52 = por %p50, %p51
      %s54 = sadd.s32 %s53, 1
      %p57 = scmp.eq.s32.totalorder %s19, 1
      %p58 = scmp.ne.s32.totalorder %s53, %s55
      %p59 = scmp.eq.s32.totalorder %s19, 0
      %p60 = por %p58, %p59
      %p61 = scmp.ne.s32.totalorder %s53, %s55
      %p62 = scmp.eq.s32.totalorder %s24, 1
      %p63 = por %p61, %p62
      %p64 = scmp.ne.s32.totalorder %s55, %s56
      %p65 = scmp.eq.s32.totalorder %s24, 0
      %p66 = por %p64, %p65
      %p67 = scmp.ne.s32.totalorder %s55, %s56
      %p68 = scmp.eq.s32.totalorder %s25, 1
      %p69 = por %p67, %p68
      %p71 = scmp.ne.s32.totalorder %s56, %s70
      %p72 = scmp.eq.s32.totalorder %s25, 0
      %p73 = por %p71, %p72
      %s75 = sadd.s32 %s74, 1
      %p78 = scmp.eq.s32.totalorder %s19, 1
      %p79 = scmp.ne.s32.totalorder %s74, %s76
      %p80 = scmp.eq.s32.totalorder %s19, 0
      %p81 = por %p79, %p80
      %p82 = scmp.ne.s32.totalorder %s74, %s76
      %p83 = scmp.eq.s32.totalorder %s24, 1
      %p84 = por %p82, %p83
      %p85 = scmp.ne.s32.totalorder %s76, %s77
      %p86 = scmp.eq.s32.totalorder %s24, 0
      %p87 = por %p85, %p86
      %p88 = scmp.ne.s32.totalorder %s76, %s77
      %p89 = scmp.eq.s32.totalorder %s25, 1
      %p90 = por %p88, %p89
      %p92 = scmp.ne.s32.totalorder %s77, %s91
      %p93 = scmp.eq.s32.totalorder %s25, 0
      %p94 = por %p92, %p93
      %s96 = sadd.s32 %s95, 1
      %p99 = scmp.eq.s32.totalorder %s19, 1
      %p100 = scmp.ne.s32.totalorder %s95, %s97
      %p101 = scmp.eq.s32.totalorder %s19, 0
      %p102 = por %p100, %p101
      %p103 = scmp.ne.s32.totalorder %s95, %s97
      %p104 = scmp.eq.s32.totalorder %s24, 1
      %p105 = por %p103, %p104
      %p106 = scmp.ne.s32.totalorder %s97, %s98
      %p107 = scmp.eq.s32.totalorder %s24, 0
      %p108 = por %p106, %p107
      %p109 = scmp.ne.s32.totalorder %s97, %s98
      %p110 = scmp.eq.s32.totalorder %s25, 1
      %p111 = por %p109, %p110
      %p113 = scmp.ne.s32.totalorder %s98, %s112
      %p114 = scmp.eq.s32.totalorder %s25, 0
      %p115 = por %p113, %p114
      %s117 = sadd.s32 %s116, 1
      %p120 = scmp.eq.s32.totalorder %s19, 1
      %p121 = scmp.ne.s32.totalorder %s116, %s118
      %p122 = scmp.eq.s32.totalorder %s19, 0
      %p123 = por %p121, %p122
      %p124 = scmp.ne.s32.totalorder %s116, %s118
      %p125 = scmp.eq.s32.totalorder %s24, 1
      %p126 = por %p124, %p125
      %p127 = scmp.ne.s32.totalorder %s118, %s119
      %p128 = scmp.eq.s32.totalorder %s24, 0
      %p129 = por %p127, %p128
      %p130 = scmp.ne.s32.totalorder %s118, %s119
      %p131 = scmp.eq.s32.totalorder %s25, 1
      %p132 = por %p130, %p131
      %p134 = scmp.ne.s32.totalorder %s119, %s133
      %p135 = scmp.eq.s32.totalorder %s25, 0
      %p136 = por %p134, %p135
      %s138 = sadd.s32 %s137, 1
      %p141 = scmp.eq.s32.totalorder %s19, 1
      %p142 = scmp.ne.s32.totalorder %s137, %s139
      %p143 = scmp.eq.s32.totalorder %s19, 0
      %p144 = por %p142, %p143
      %p145 = scmp.ne.s32.totalorder %s137, %s139
      %p146 = scmp.eq.s32.totalorder %s24, 1
      %p147 = por %p145, %p146
      %p148 = scmp.ne.s32.totalorder %s139, %s140
      %p149 = scmp.eq.s32.totalorder %s24, 0
      %p150 = por %p148, %p149
      %p151 = scmp.ne.s32.totalorder %s139, %s140
      %p152 = scmp.eq.s32.totalorder %s25, 1
      %p153 = por %p151, %p152
      %p155 = scmp.ne.s32.totalorder %s140, %s154
      %p156 = scmp.eq.s32.totalorder %s25, 0
      %p157 = por %p155, %p156
      %s159 = sadd.s32 %s158, 1
      %p162 = scmp.eq.s32.totalorder %s19, 1
      %p163 = scmp.ne.s32.totalorder %s158, %s160
      %p164 = scmp.eq.s32.totalorder %s19, 0
      %p165 = por %p163, %p164
      %p166 = scmp.ne.s32.totalorder %s158, %s160
      %p167 = scmp.eq.s32.totalorder %s24, 1
      %p168 = por %p166, %p167
      %p169 = scmp.ne.s32.totalorder %s160, %s161
      %p170 = scmp.eq.s32.totalorder %s24, 0
      %p171 = por %p169, %p170
      %p172 = scmp.ne.s32.totalorder %s160, %s161
      %p173 = scmp.eq.s32.totalorder %s25, 1
      %p174 = por %p172, %p173
      %p176 = scmp.ne.s32.totalorder %s161, %s175
      %p177 = scmp.eq.s32.totalorder %s25, 0
      %p178 = por %p176, %p177
      %s180 = sadd.s32 %s179, 1
      %p183 = scmp.eq.s32.totalorder %s19, 1
      %p184 = scmp.ne.s32.totalorder %s179, %s181
      %p185 = scmp.eq.s32.totalorder %s19, 0
      %p186 = por %p184, %p185
      %p187 = scmp.ne.s32.totalorder %s179, %s181
      %p188 = scmp.eq.s32.totalorder %s24, 1
      %p189 = por %p187, %p188
      %p190 = scmp.ne.s32.totalorder %s181, %s182
      %p191 = scmp.eq.s32.totalorder %s24, 0
      %p192 = por %p190, %p191
      %p193 = scmp.ne.s32.totalorder %s181, %s182
      %p194 = scmp.eq.s32.totalorder %s25, 1
      %p195 = por %p193, %p194
      %p197 = scmp.ne.s32.totalorder %s182, %s196
      %p198 = scmp.eq.s32.totalorder %s25, 0
      %p199 = por %p197, %p198
      %s201 = sadd.s32 %s200, 1
      %p204 = scmp.eq.s32.totalorder %s19, 1
      %p205 = scmp.ne.s32.totalorder %s200, %s202
      %p206 = scmp.eq.s32.totalorder %s19, 0
      %p207 = por %p205, %p206
      %p208 = scmp.ne.s32.totalorder %s200, %s202
      %p209 = scmp.eq.s32.totalorder %s24, 1
      %p210 = por %p208, %p209
      %p211 = scmp.ne.s32.totalorder %s202, %s203
      %p212 = scmp.eq.s32.totalorder %s24, 0
      %p213 = por %p211, %p212
      %p214 = scmp.ne.s32.totalorder %s202, %s203
      %p215 = scmp.eq.s32.totalorder %s25, 1
      %p216 = por %p214, %p215
      %p218 = scmp.ne.s32.totalorder %s203, %s217
      %p219 = scmp.eq.s32.totalorder %s25, 0
      %p220 = por %p218, %p219
      %s222 = sadd.s32 %s221, 1
      %p225 = scmp.eq.s32.totalorder %s19, 1
      %p226 = scmp.ne.s32.totalorder %s221, %s223
      %p227 = scmp.eq.s32.totalorder %s19, 0
      %p228 = por %p226, %p227
      %p229 = scmp.ne.s32.totalorder %s221, %s223
      %p230 = scmp.eq.s32.totalorder %s24, 1
      %p231 = por %p229, %p230
      %p232 = scmp.ne.s32.totalorder %s223, %s224
      %p233 = scmp.eq.s32.totalorder %s24, 0
      %p234 = por %p232, %p233
      %p235 = scmp.ne.s32.totalorder %s223, %s224
      %p236 = scmp.eq.s32.totalorder %s25, 1
      %p237 = por %p235, %p236
      %p239 = scmp.ne.s32.totalorder %s224, %s238
      %p240 = scmp.eq.s32.totalorder %s25, 0
      %p241 = por %p239, %p240
      %p242 = scmp.le.s32.totalorder 1, %s19
      %p243 = scmp.lt.s32.totalorder %s19, 3
      %p244 = pnand %p242, %p243
      %p245 = pneg %p244
      // Predicated region
      $region9: #{tpu_custom_call.1} parent=5 // pred_check
        _
      $region10: #{tpu_custom_call.1} parent=5 // pred_check_branch
        %247 = sbr.rel (%p244) target = $region12
      $region11: #{tpu_custom_call.1} parent=5 // pred_region
        %s248 = ssub.s32 %s19, 1
        // Predicated region
        $region13: #{tpu_custom_call.1} parent=11 // pred_check
          %p249 = pneg %p66
        $region14: #{tpu_custom_call.1} parent=11 // pred_check_branch
          %251 = sbr.rel (%p249) target = $region16
        $region15: #{tpu_custom_call.1} parent=11 // pred_region
          _
        $region16: #{tpu_custom_call.1} parent=11 // pred_fallthru
          _
        // Predicated region
        $region17: #{tpu_custom_call.1} parent=11 // pred_check
          %p252 = pneg %p87
        $region18: #{tpu_custom_call.1} parent=11 // pred_check_branch
          %254 = sbr.rel (%p252) target = $region20
        $region19: #{tpu_custom_call.1} parent=11 // pred_region
          _
        $region20: #{tpu_custom_call.1} parent=11 // pred_fallthru
          _
        // Predicated region
        $region21: #{tpu_custom_call.1} parent=11 // pred_check
          %p255 = pneg %p108
        $region22: #{tpu_custom_call.1} parent=11 // pred_check_branch
          %257 = sbr.rel (%p255) target = $region24
        $region23: #{tpu_custom_call.1} parent=11 // pred_region
          _
        $region24: #{tpu_custom_call.1} parent=11 // pred_fallthru
          _
        // Predicated region
        $region25: #{tpu_custom_call.1} parent=11 // pred_check
          %p258 = pneg %p129
        $region26: #{tpu_custom_call.1} parent=11 // pred_check_branch
          %260 = sbr.rel (%p258) target = $region28
        $region27: #{tpu_custom_call.1} parent=11 // pred_region
          _
        $region28: #{tpu_custom_call.1} parent=11 // pred_fallthru
          _
        // Predicated region
        $region29: #{tpu_custom_call.1} parent=11 // pred_check
          %p261 = pneg %p150
        $region30: #{tpu_custom_call.1} parent=11 // pred_check_branch
          %263 = sbr.rel (%p261) target = $region32
        $region31: #{tpu_custom_call.1} parent=11 // pred_region
          _
        $region32: #{tpu_custom_call.1} parent=11 // pred_fallthru
          _
        // Predicated region
        $region33: #{tpu_custom_call.1} parent=11 // pred_check
          %p264 = pneg %p171
        $region34: #{tpu_custom_call.1} parent=11 // pred_check_branch
          %266 = sbr.rel (%p264) target = $region36
        $region35: #{tpu_custom_call.1} parent=11 // pred_region
          %s268 = ssub.s32 24576, 24576
          %269 = vsyncadd [#allocation3], %s268
          %s270 = sshll.u32 [#allocation2], 4
          %s271 = int_to_ptr.vmem [resolvable:$true] %s270
          %276 = dma.hbm_to_vmem [thread:$0]  %s6, 24576, %s271, [#allocation3], 128, 128, 8
        $region36: #{tpu_custom_call.1} parent=11 // pred_fallthru
          _
        // Predicated region
        $region37: #{tpu_custom_call.1} parent=11 // pred_check
          %p277 = pneg %p192
        $region38: #{tpu_custom_call.1} parent=11 // pred_check_branch
          %279 = sbr.rel (%p277) target = $region40
        $region39: #{tpu_custom_call.1} parent=11 // pred_region
          _
        $region40: #{tpu_custom_call.1} parent=11 // pred_fallthru
          _
      $region12: #{tpu_custom_call.1} parent=5 // pred_fallthru
        _
      %p280 = scmp.lt.s32.totalorder %s19, 2
      // Predicated region
      $region41: #{tpu_custom_call.1} parent=5 // pred_check
        %p281 = pneg %p280
      $region42: #{tpu_custom_call.1} parent=5 // pred_check_branch
        %283 = sbr.rel (%p281) target = $region44
      $region43: #{tpu_custom_call.1} parent=5 // pred_region
        // Predicated region
        $region45: #{tpu_custom_call.1} parent=43 // pred_check
          %p284 = pneg %p39
        $region46: #{tpu_custom_call.1} parent=43 // pred_check_branch
          %286 = sbr.rel (%p284) target = $region48
        $region47: #{tpu_custom_call.1} parent=43 // pred_region
          %p287 = scmp.lt.s32.totalorder %s19, 1
          %s288 = scalar_select %p287, %s19, 1
          %s289 = smul.addr %s288, 64
          %s290 = smul.addr %s289, 8
          %s291 = scalar_lea.vmem %s0, %s290
        $region48: #{tpu_custom_call.1} parent=43 // pred_fallthru
          _
      $region44: #{tpu_custom_call.1} parent=5 // pred_fallthru
        _
      %p292 = scmp.le.s32.totalorder 1, %s19
      %p293 = scmp.lt.s32.totalorder %s19, 3
      %p294 = pnand %p292, %p293
      %p295 = pneg %p294
      // Predicated region
      $region49: #{tpu_custom_call.1} parent=5 // pred_check
        _
      $region50: #{tpu_custom_call.1} parent=5 // pred_check_branch
        %297 = sbr.rel (%p294) target = $region52
      $region51: #{tpu_custom_call.1} parent=5 // pred_region
        %s298 = ssub.s32 %s19, 1
        // Predicated region
        $region53: #{tpu_custom_call.1} parent=51 // pred_check
          %p299 = pneg %p171
        $region54: #{tpu_custom_call.1} parent=51 // pred_check_branch
          %301 = sbr.rel (%p299) target = $region56
        $region55: #{tpu_custom_call.1} parent=51 // pred_region
          %302 = dma.done [#allocation3], 24576
        $region56: #{tpu_custom_call.1} parent=51 // pred_fallthru
          _
        %p303 = scmp.lt.s32.totalorder %s24, 1
        %s304 = scalar_select %p303, %s24, 1
        %s305 = smul.addr %s304, 64
        %s306 = smul.addr %s305, 8
        %s307 = scalar_lea.vmem %s0, %s306
        %p308 = pneg %p45
        %p309 = pneg %p42
        %p310 = pneg %p66
        %p311 = pneg %p63
        %p312 = pneg %p87
        %p313 = pneg %p84
        %p314 = pneg %p108
        %p315 = pneg %p105
        %p316 = pneg %p129
        %p317 = pneg %p126
        %p318 = pneg %p150
        %p319 = pneg %p147
        %p320 = pneg %p171
        %p321 = pneg %p168
        %p322 = pneg %p192
        %p323 = pneg %p189
        %p324 = pneg %p213
        %p325 = pneg %p210
        %p326 = pneg %p234
        %p327 = pneg %p231
        %p328 = scmp.lt.s32.totalorder %s24, 1
        %s329 = scalar_select %p328, %s24, 1
        %s330 = smul.addr %s329, 64
        %s331 = smul.addr %s330, 8
        %s332 = scalar_lea.vmem %s0, %s331
        %v333 = vld [vmem:[%s332] sm:$0xff]
        %v334 = vld [vmem:[%s332 + $0x8] sm:$0xff]
        %v335 = vld [vmem:[%s332 + $0x10] sm:$0xff]
        %v336 = vld [vmem:[%s332 + $0x18] sm:$0xff]
        %v337 = vld [vmem:[%s332 + $0x20] sm:$0xff]
        %v338 = vld [vmem:[%s332 + $0x28] sm:$0xff]
        %v339 = vld [vmem:[%s332 + $0x30] sm:$0xff]
        %v340 = vld [vmem:[%s332 + $0x38] sm:$0xff]
        %v341 = vld [vmem:[%s332 + $0x40] sm:$0xff]
        %v342 = vld [vmem:[%s332 + $0x48] sm:$0xff]
        %v343 = vld [vmem:[%s332 + $0x50] sm:$0xff]
        %v344 = vld [vmem:[%s332 + $0x58] sm:$0xff]
        %v345 = vld [vmem:[%s332 + $0x60] sm:$0xff]
        %v346 = vld [vmem:[%s332 + $0x68] sm:$0xff]
        %v347 = vld [vmem:[%s332 + $0x70] sm:$0xff]
        %v348 = vld [vmem:[%s332 + $0x78] sm:$0xff]
        %v349 = vld [vmem:[%s332 + $0x80] sm:$0xff]
        %v350 = vld [vmem:[%s332 + $0x88] sm:$0xff]
        %v351 = vld [vmem:[%s332 + $0x90] sm:$0xff]
        %v352 = vld [vmem:[%s332 + $0x98] sm:$0xff]
        %v353 = vld [vmem:[%s332 + $0xa0] sm:$0xff]
        %v354 = vld [vmem:[%s332 + $0xa8] sm:$0xff]
        %v355 = vld [vmem:[%s332 + $0xb0] sm:$0xff]
        %v356 = vld [vmem:[%s332 + $0xb8] sm:$0xff]
        %v357 = vld [vmem:[%s332 + $0xc0] sm:$0xff]
        %v358 = vld [vmem:[%s332 + $0xc8] sm:$0xff]
        %v359 = vld [vmem:[%s332 + $0xd0] sm:$0xff]
        %v360 = vld [vmem:[%s332 + $0xd8] sm:$0xff]
        %v361 = vld [vmem:[%s332 + $0xe0] sm:$0xff]
        %v362 = vld [vmem:[%s332 + $0xe8] sm:$0xff]
        %v363 = vld [vmem:[%s332 + $0xf0] sm:$0xff]
        %v364 = vld [vmem:[%s332 + $0xf8] sm:$0xff]
        %v365 = vld [vmem:[%s332 + $0x100] sm:$0xff]
        %v366 = vld [vmem:[%s332 + $0x108] sm:$0xff]
        %v367 = vld [vmem:[%s332 + $0x110] sm:$0xff]
        %v368 = vld [vmem:[%s332 + $0x118] sm:$0xff]
        %v369 = vld [vmem:[%s332 + $0x120] sm:$0xff]
        %v370 = vld [vmem:[%s332 + $0x128] sm:$0xff]
        %v371 = vld [vmem:[%s332 + $0x130] sm:$0xff]
        %v372 = vld [vmem:[%s332 + $0x138] sm:$0xff]
        %v373 = vld [vmem:[%s332 + $0x140] sm:$0xff]
        %v374 = vld [vmem:[%s332 + $0x148] sm:$0xff]
        %v375 = vld [vmem:[%s332 + $0x150] sm:$0xff]
        %v376 = vld [vmem:[%s332 + $0x158] sm:$0xff]
        %v377 = vld [vmem:[%s332 + $0x160] sm:$0xff]
        %v378 = vld [vmem:[%s332 + $0x168] sm:$0xff]
        %v379 = vld [vmem:[%s332 + $0x170] sm:$0xff]
        %v380 = vld [vmem:[%s332 + $0x178] sm:$0xff]
        %v381 = vld [vmem:[%s332 + $0x180] sm:$0xff]
        %v382 = vld [vmem:[%s332 + $0x188] sm:$0xff]
        %v383 = vld [vmem:[%s332 + $0x190] sm:$0xff]
        %v384 = vld [vmem:[%s332 + $0x198] sm:$0xff]
        %v385 = vld [vmem:[%s332 + $0x1a0] sm:$0xff]
        %v386 = vld [vmem:[%s332 + $0x1a8] sm:$0xff]
        %v387 = vld [vmem:[%s332 + $0x1b0] sm:$0xff]
        %v388 = vld [vmem:[%s332 + $0x1b8] sm:$0xff]
        %v389 = vld [vmem:[%s332 + $0x1c0] sm:$0xff]
        %v390 = vld [vmem:[%s332 + $0x1c8] sm:$0xff]
        %v391 = vld [vmem:[%s332 + $0x1d0] sm:$0xff]
        %v392 = vld [vmem:[%s332 + $0x1d8] sm:$0xff]
        %v393 = vld [vmem:[%s332 + $0x1e0] sm:$0xff]
        %v394 = vld [vmem:[%s332 + $0x1e8] sm:$0xff]
        %v395 = vld [vmem:[%s332 + $0x1f0] sm:$0xff]
        %v396 = vld [vmem:[%s332 + $0x1f8] sm:$0xff]
        %v397 = vld [vmem:[%s1] sm:$0x3f]
        %vm398 = vcmask 392192
        %v400 = vsel %vm398, %v397, 0
        %v403 = vsel %vm398, %v333, 0
        %v406 = vsel %vm398, %v334, 0
        %v409 = vsel %vm398, %v335, 0
        %v412 = vsel %vm398, %v336, 0
        %v415 = vsel %vm398, %v337, 0
        %v418 = vsel %vm398, %v338, 0
        %v421 = vsel %vm398, %v339, 0
        %v424 = vsel %vm398, %v340, 0
        %v427 = vsel %vm398, %v341, 0
        %v430 = vsel %vm398, %v342, 0
        %v433 = vsel %vm398, %v343, 0
        %v436 = vsel %vm398, %v344, 0
        %v439 = vsel %vm398, %v345, 0
        %v442 = vsel %vm398, %v346, 0
        %v445 = vsel %vm398, %v347, 0
        %v448 = vsel %vm398, %v348, 0
        %v451 = vsel %vm398, %v349, 0
        %v454 = vsel %vm398, %v350, 0
        %v457 = vsel %vm398, %v351, 0
        %v460 = vsel %vm398, %v352, 0
        %v463 = vsel %vm398, %v353, 0
        %v466 = vsel %vm398, %v354, 0
        %v469 = vsel %vm398, %v355, 0
        %v472 = vsel %vm398, %v356, 0
        %v475 = vsel %vm398, %v357, 0
        %v478 = vsel %vm398, %v358, 0
        %v481 = vsel %vm398, %v359, 0
        %v484 = vsel %vm398, %v360, 0
        %v487 = vsel %vm398, %v361, 0
        %v490 = vsel %vm398, %v362, 0
        %v493 = vsel %vm398, %v363, 0
        %v496 = vsel %vm398, %v364, 0
        %v499 = vsel %vm398, %v365, 0
        %v502 = vsel %vm398, %v366, 0
        %v505 = vsel %vm398, %v367, 0
        %v508 = vsel %vm398, %v368, 0
        %v511 = vsel %vm398, %v369, 0
        %v514 = vsel %vm398, %v370, 0
        %v517 = vsel %vm398, %v371, 0
        %v520 = vsel %vm398, %v372, 0
        %v523 = vsel %vm398, %v373, 0
        %v526 = vsel %vm398, %v374, 0
        %v529 = vsel %vm398, %v375, 0
        %v532 = vsel %vm398, %v376, 0
        %v535 = vsel %vm398, %v377, 0
        %v538 = vsel %vm398, %v378, 0
        %v541 = vsel %vm398, %v379, 0
        %v544 = vsel %vm398, %v380, 0
        %v547 = vsel %vm398, %v381, 0
        %v550 = vsel %vm398, %v382, 0
        %v553 = vsel %vm398, %v383, 0
        %v556 = vsel %vm398, %v384, 0
        %v559 = vsel %vm398, %v385, 0
        %v562 = vsel %vm398, %v386, 0
        %v565 = vsel %vm398, %v387, 0
        %v568 = vsel %vm398, %v388, 0
        %v571 = vsel %vm398, %v389, 0
        %v574 = vsel %vm398, %v390, 0
        %v577 = vsel %vm398, %v391, 0
        %v580 = vsel %vm398, %v392, 0
        %v583 = vsel %vm398, %v393, 0
        %v586 = vsel %vm398, %v394, 0
        %v589 = vsel %vm398, %v395, 0
        %v592 = vsel %vm398, %v396, 0
        %594 = vmatprep.subr.mxu0 0.0
        %595 = vmatpush1.xpose.msra.mxu0 %v448
        %596 = vmatprep.subr.mxu0 0.0
        %597 = vmatpush1.xpose.msra.mxu0 %v445
        %598 = vmatprep.subr.mxu0 0.0
        %599 = vmatpush1.xpose.msra.mxu0 %v442
        %600 = vmatprep.subr.mxu0 0.0
        %601 = vmatpush1.xpose.msra.mxu0 %v439
        %602 = vmatprep.subr.mxu0 0.0
        %603 = vmatpush1.xpose.msra.mxu0 %v436
        %604 = vmatprep.subr.mxu0 0.0
        %605 = vmatpush1.xpose.msra.mxu0 %v433
        %606 = vmatprep.subr.mxu0 0.0
        %607 = vmatpush1.xpose.msra.mxu0 %v430
        %608 = vmatprep.subr.mxu0 0.0
        %609 = vmatpush1.xpose.msra.mxu0 %v427
        %610 = vmatprep.subr.mxu0 0.0
        %611 = vmatpush1.xpose.msra.mxu0 %v424
        %612 = vmatprep.subr.mxu0 0.0
        %613 = vmatpush1.xpose.msra.mxu0 %v421
        %614 = vmatprep.subr.mxu0 0.0
        %615 = vmatpush1.xpose.msra.mxu0 %v418
        %616 = vmatprep.subr.mxu0 0.0
        %617 = vmatpush1.xpose.msra.mxu0 %v415
        %618 = vmatprep.subr.mxu0 0.0
        %619 = vmatpush1.xpose.msra.mxu0 %v412
        %620 = vmatprep.subr.mxu0 0.0
        %621 = vmatpush1.xpose.msra.mxu0 %v409
        %622 = vmatprep.subr.mxu0 0.0
        %623 = vmatpush1.xpose.msra.mxu0 %v406
        %624 = vmatprep.subr.mxu0 0.0
        %625 = vmatpush1.xpose.msra.mxu0 %v403
        %626 = vmatprep.subr.mxu0 0.0
        %627 = vmatpush2.xpose.msra.mxu0 %v496
        %628 = vmatprep.subr.mxu0 0.0
        %629 = vmatpush2.xpose.msra.mxu0 %v493
        %630 = vmatprep.subr.mxu0 0.0
        %631 = vmatpush2.xpose.msra.mxu0 %v490
        %632 = vmatprep.subr.mxu0 0.0
        %633 = vmatpush2.xpose.msra.mxu0 %v487
        %634 = vmatprep.subr.mxu0 0.0
        %635 = vmatpush2.xpose.msra.mxu0 %v484
        %636 = vmatprep.subr.mxu0 0.0
        %637 = vmatpush2.xpose.msra.mxu0 %v481
        %638 = vmatprep.subr.mxu0 0.0
        %639 = vmatpush2.xpose.msra.mxu0 %v478
        %640 = vmatprep.subr.mxu0 0.0
        %641 = vmatpush2.xpose.msra.mxu0 %v475
        %642 = vmatprep.subr.mxu0 0.0
        %643 = vmatpush2.xpose.msra.mxu0 %v472
        %644 = vmatprep.subr.mxu0 0.0
        %645 = vmatpush2.xpose.msra.mxu0 %v469
        %646 = vmatprep.subr.mxu0 0.0
        %647 = vmatpush2.xpose.msra.mxu0 %v466
        %648 = vmatprep.subr.mxu0 0.0
        %649 = vmatpush2.xpose.msra.mxu0 %v463
        %650 = vmatprep.subr.mxu0 0.0
        %651 = vmatpush2.xpose.msra.mxu0 %v460
        %652 = vmatprep.subr.mxu0 0.0
        %653 = vmatpush2.xpose.msra.mxu0 %v457
        %654 = vmatprep.subr.mxu0 0.0
        %655 = vmatpush2.xpose.msra.mxu0 %v454
        %656 = vmatprep.subr.mxu0 0.0
        %657 = vmatpush2.xpose.msra.mxu0 %v451
        %658 = vmatprep.mubr.f32.mxu0 0.0
        %659 = vmatmul.mubr.f32.gmra.mxu0 %v400
        %v660 = vpop.f32.mrf.mxu0
        %v661 = vadd.f32 0.0, %v660
        %v662 = vpop.f32.mrf.mxu0
        %v663 = vadd.f32 0.0, %v662
        %664 = vdwg.mxu0
        %665 = vmatprep.subr.mxu0 0.0
        %666 = vmatpush1.xpose.msra.mxu0 %v544
        %667 = vmatprep.subr.mxu0 0.0
        %668 = vmatpush1.xpose.msra.mxu0 %v541
        %669 = vmatprep.subr.mxu0 0.0
        %670 = vmatpush1.xpose.msra.mxu0 %v538
        %671 = vmatprep.subr.mxu0 0.0
        %672 = vmatpush1.xpose.msra.mxu0 %v535
        %673 = vmatprep.subr.mxu0 0.0
        %674 = vmatpush1.xpose.msra.mxu0 %v532
        %675 = vmatprep.subr.mxu0 0.0
        %676 = vmatpush1.xpose.msra.mxu0 %v529
        %677 = vmatprep.subr.mxu0 0.0
        %678 = vmatpush1.xpose.msra.mxu0 %v526
        %679 = vmatprep.subr.mxu0 0.0
        %680 = vmatpush1.xpose.msra.mxu0 %v523
        %681 = vmatprep.subr.mxu0 0.0
        %682 = vmatpush1.xpose.msra.mxu0 %v520
        %683 = vmatprep.subr.mxu0 0.0
        %684 = vmatpush1.xpose.msra.mxu0 %v517
        %685 = vmatprep.subr.mxu0 0.0
        %686 = vmatpush1.xpose.msra.mxu0 %v514
        %687 = vmatprep.subr.mxu0 0.0
        %688 = vmatpush1.xpose.msra.mxu0 %v511
        %689 = vmatprep.subr.mxu0 0.0
        %690 = vmatpush1.xpose.msra.mxu0 %v508
        %691 = vmatprep.subr.mxu0 0.0
        %692 = vmatpush1.xpose.msra.mxu0 %v505
        %693 = vmatprep.subr.mxu0 0.0
        %694 = vmatpush1.xpose.msra.mxu0 %v502
        %695 = vmatprep.subr.mxu0 0.0
        %696 = vmatpush1.xpose.msra.mxu0 %v499
        %697 = vmatprep.subr.mxu0 0.0
        %698 = vmatpush2.xpose.msra.mxu0 %v592
        %699 = vmatprep.subr.mxu0 0.0
        %700 = vmatpush2.xpose.msra.mxu0 %v589
        %701 = vmatprep.subr.mxu0 0.0
        %702 = vmatpush2.xpose.msra.mxu0 %v586
        %703 = vmatprep.subr.mxu0 0.0
        %704 = vmatpush2.xpose.msra.mxu0 %v583
        %705 = vmatprep.subr.mxu0 0.0
        %706 = vmatpush2.xpose.msra.mxu0 %v580
        %707 = vmatprep.subr.mxu0 0.0
        %708 = vmatpush2.xpose.msra.mxu0 %v577
        %709 = vmatprep.subr.mxu0 0.0
        %710 = vmatpush2.xpose.msra.mxu0 %v574
        %711 = vmatprep.subr.mxu0 0.0
        %712 = vmatpush2.xpose.msra.mxu0 %v571
        %713 = vmatprep.subr.mxu0 0.0
        %714 = vmatpush2.xpose.msra.mxu0 %v568
        %715 = vmatprep.subr.mxu0 0.0
        %716 = vmatpush2.xpose.msra.mxu0 %v565
        %717 = vmatprep.subr.mxu0 0.0
        %718 = vmatpush2.xpose.msra.mxu0 %v562
        %719 = vmatprep.subr.mxu0 0.0
        %720 = vmatpush2.xpose.msra.mxu0 %v559
        %721 = vmatprep.subr.mxu0 0.0
        %722 = vmatpush2.xpose.msra.mxu0 %v556
        %723 = vmatprep.subr.mxu0 0.0
        %724 = vmatpush2.xpose.msra.mxu0 %v553
        %725 = vmatprep.subr.mxu0 0.0
        %726 = vmatpush2.xpose.msra.mxu0 %v550
        %727 = vmatprep.subr.mxu0 0.0
        %728 = vmatpush2.xpose.msra.mxu0 %v547
        %729 = vmatprep.mubr.f32.mxu0 0.0
        %730 = vmatmul.mubr.f32.gmra.mxu0 %v400
        %v731 = vpop.f32.mrf.mxu0
        %v732 = vadd.f32 0.0, %v731
        %v733 = vpop.f32.mrf.mxu0
        %v734 = vadd.f32 0.0, %v733
        %735 = vdwg.mxu0
        %v740 = vcombine.low %v661, %v663
        %v741 = vcombine.low %v732, %v734
        %v743 = vunpack.c.l.s4 1966171168
        %v744 = vunpack.c.0.s8 %v743
        %v745 = vlaneseq
        %v746 = vshrl.u32 %v745, 7
        %v747 = vsub.s32 %v744, %v746
        %v748 = vrot.slane %v740, %v747
        %v750 = vunpack.c.l.s4 1966171168
        %v751 = vunpack.c.0.s8 %v750
        %v752 = vlaneseq
        %v753 = vshrl.u32 %v752, 7
        %v754 = vsub.s32 %v751, %v753
        %v755 = vrot.slane %v741, %v754
        %v756 = vcombine.low %v748, %v755
        %v758 = vunpack.c.l.s4 1966171168
        %v759 = vunpack.c.0.s8 %v758
        %v760 = vlaneseq
        %v761 = vshrl.u32 %v760, 7
        %v762 = vsub.s32 %v759, %v761
        %v763 = vrot.slane %v756, %v762
        %v765 = vlaneseq
        %vm766 = vcmp.ge.s32.totalorder %v765, 0
        %vm767 = vcmp.lt.s32.totalorder %v765, 512
        %vm768 = vmand %vm766, %vm767
        %s769 = sshra.s32 %s24, 3
        %s770 = sand.u32 %s24, 7
        %s771 = sshra.s32 %s24, 3
        %s772 = sand.u32 %s24, 7
        %s773 = smul.u32 %s769, 4
        %s774 = smul.u32 %s773, 8
        %s775 = sadd.s32 %s774, %s772
        %s776 = scalar_lea.vmem [#allocation5], %s775
        %777 = vst.msk [vmem:[%s776] ss:$8 sm:$0xf] %vm768, %v763
        %778 = vst.msk [vmem:[%s776] ss:$8 sm:$0x0] %vm768, %v763
        %s779 = sadd.s32 %s24, 2
        %v780 = vcombine.high %v748, %v755
        %v782 = vunpack.c.l.s4 1966171168
        %v783 = vunpack.c.0.s8 %v782
        %v784 = vlaneseq
        %v785 = vshrl.u32 %v784, 7
        %v786 = vsub.s32 %v783, %v785
        %v787 = vrot.slane %v780, %v786
        %s789 = sshra.s32 %s779, 3
        %s790 = sand.u32 %s779, 7
        %s791 = sshra.s32 %s779, 3
        %s792 = sand.u32 %s779, 7
        %s793 = smul.u32 %s789, 4
        %s794 = smul.u32 %s793, 8
        %s795 = sadd.s32 %s794, %s792
        %s796 = scalar_lea.vmem [#allocation5], %s795
        %797 = vst.msk [vmem:[%s796] ss:$8 sm:$0xf] %vm768, %v787
        %798 = vst.msk [vmem:[%s796] ss:$8 sm:$0x0] %vm768, %v787
        %s799 = sadd.s32 %s24, 4
        %v800 = vcombine.high %v763, %v763
        %s802 = sshra.s32 %s799, 3
        %s803 = sand.u32 %s799, 7
        %s804 = sshra.s32 %s799, 3
        %s805 = sand.u32 %s799, 7
        %s806 = smul.u32 %s802, 4
        %s807 = smul.u32 %s806, 8
        %s808 = sadd.s32 %s807, %s805
        %s809 = scalar_lea.vmem [#allocation5], %s808
        %810 = vst.msk [vmem:[%s809] ss:$8 sm:$0xf] %vm768, %v800
        %811 = vst.msk [vmem:[%s809] ss:$8 sm:$0x0] %vm768, %v800
        %s812 = sadd.s32 %s24, 6
        %v813 = vcombine.high %v787, %v787
        %s815 = sshra.s32 %s812, 3
        %s816 = sand.u32 %s812, 7
        %s817 = sshra.s32 %s812, 3
        %s818 = sand.u32 %s812, 7
        %s819 = smul.u32 %s815, 4
        %s820 = smul.u32 %s819, 8
        %s821 = sadd.s32 %s820, %s818
        %s822 = scalar_lea.vmem [#allocation5], %s821
        %823 = vst.msk [vmem:[%s822] ss:$8 sm:$0xf] %vm768, %v813
        %824 = vst.msk [vmem:[%s822] ss:$8 sm:$0x0] %vm768, %v813
        %s825 = sadd.s32 %s24, 8
        %v826 = vcombine.high %v661, %v663
        %v827 = vcombine.high %v732, %v734
        %v829 = vunpack.c.l.s4 1966171168
        %v830 = vunpack.c.0.s8 %v829
        %v831 = vlaneseq
        %v832 = vshrl.u32 %v831, 7
        %v833 = vsub.s32 %v830, %v832
        %v834 = vrot.slane %v826, %v833
        %v836 = vunpack.c.l.s4 1966171168
        %v837 = vunpack.c.0.s8 %v836
        %v838 = vlaneseq
        %v839 = vshrl.u32 %v838, 7
        %v840 = vsub.s32 %v837, %v839
        %v841 = vrot.slane %v827, %v840
        %v842 = vcombine.low %v834, %v841
        %v844 = vunpack.c.l.s4 1966171168
        %v845 = vunpack.c.0.s8 %v844
        %v846 = vlaneseq
        %v847 = vshrl.u32 %v846, 7
        %v848 = vsub.s32 %v845, %v847
        %v849 = vrot.slane %v842, %v848
        %s851 = sshra.s32 %s825, 3
        %s852 = sand.u32 %s825, 7
        %s853 = sshra.s32 %s825, 3
        %s854 = sand.u32 %s825, 7
        %s855 = smul.u32 %s851, 4
        %s856 = smul.u32 %s855, 8
        %s857 = sadd.s32 %s856, %s854
        %s858 = scalar_lea.vmem [#allocation5], %s857
        %859 = vst.msk [vmem:[%s858] ss:$8 sm:$0xf] %vm768, %v849
        %860 = vst.msk [vmem:[%s858] ss:$8 sm:$0x0] %vm768, %v849
        %s861 = sadd.s32 %s24, 10
        %v862 = vcombine.high %v834, %v841
        %v864 = vunpack.c.l.s4 1966171168
        %v865 = vunpack.c.0.s8 %v864
        %v866 = vlaneseq
        %v867 = vshrl.u32 %v866, 7
        %v868 = vsub.s32 %v865, %v867
        %v869 = vrot.slane %v862, %v868
        %s871 = sshra.s32 %s861, 3
        %s872 = sand.u32 %s861, 7
        %s873 = sshra.s32 %s861, 3
        %s874 = sand.u32 %s861, 7
        %s875 = smul.u32 %s871, 4
        %s876 = smul.u32 %s875, 8
        %s877 = sadd.s32 %s876, %s874
        %s878 = scalar_lea.vmem [#allocation5], %s877
        %879 = vst.msk [vmem:[%s878] ss:$8 sm:$0xf] %vm768, %v869
        %880 = vst.msk [vmem:[%s878] ss:$8 sm:$0x0] %vm768, %v869
        %p881 = scmp.eq.s32.totalorder %s24, 1
        // Predicated region
        $region57: #{tpu_custom_call.1} parent=51 // pred_check
          %p882 = pneg %p881
        $region58: #{tpu_custom_call.1} parent=51 // pred_check_branch
          %884 = sbr.rel (%p882) target = $region60
        $region59: #{tpu_custom_call.1} parent=51 // pred_region
          %v885 = vld [vmem:[#allocation5] sm:$0xff]
          %v886 = vld [vmem:[#allocation5 + $0x8] sm:$0xff]
          %v887 = vld [vmem:[#allocation5 + $0x10] sm:$0xff]
          %v888 = vld [vmem:[#allocation5 + $0x18] sm:$0xff]
          %v889 = vld [vmem:[#allocation5 + $0x20] sm:$0xf]
          %v890 = vld [vmem:[#allocation5 + $0x28] sm:$0xf]
          %v891 = vld [vmem:[#allocation5 + $0x30] sm:$0xf]
          %v892 = vld [vmem:[#allocation5 + $0x38] sm:$0xf]
          %v893 = vld [vmem:[%s2] sm:$0xff]
          %v894 = vld [vmem:[%s2 + $0x8] sm:$0xff]
          %v895 = vld [vmem:[%s2 + $0x10] sm:$0xff]
          %v896 = vld [vmem:[%s2 + $0x18] sm:$0xff]
          %v897 = vld [vmem:[%s2 + $0x20] sm:$0xf]
          %v898 = vld [vmem:[%s2 + $0x28] sm:$0xf]
          %v899 = vld [vmem:[%s2 + $0x30] sm:$0xf]
          %v900 = vld [vmem:[%s2 + $0x38] sm:$0xf]
          %v901 = vmul.f32 %v885, %v893
          %v902 = vmul.f32 %v886, %v894
          %v903 = vmul.f32 %v887, %v895
          %v904 = vmul.f32 %v888, %v896
          %v905 = vmul.f32 %v889, %v897
          %v906 = vmul.f32 %v890, %v898
          %v907 = vmul.f32 %v891, %v899
          %v908 = vmul.f32 %v892, %v900
          %v909 = vld [vmem:[%s3] sm:$0xff]
          %v910 = vld [vmem:[%s3 + $0x8] sm:$0xff]
          %v911 = vld [vmem:[%s3 + $0x10] sm:$0xff]
          %v912 = vld [vmem:[%s3 + $0x18] sm:$0xff]
          %v913 = vld [vmem:[%s3 + $0x20] sm:$0xff]
          %v914 = vld [vmem:[%s3 + $0x28] sm:$0xff]
          %v915 = vld [vmem:[%s3 + $0x30] sm:$0xff]
          %v916 = vld [vmem:[%s3 + $0x38] sm:$0xff]
          %v917 = vld [vmem:[%s3 + $0x40] sm:$0xff]
          %v918 = vld [vmem:[%s3 + $0x48] sm:$0xff]
          %v919 = vld [vmem:[%s3 + $0x50] sm:$0xff]
          %v920 = vld [vmem:[%s3 + $0x58] sm:$0xff]
          %v921 = vld [vmem:[%s3 + $0x60] sm:$0xff]
          %v922 = vld [vmem:[%s3 + $0x68] sm:$0xff]
          %v923 = vld [vmem:[%s3 + $0x70] sm:$0xff]
          %v924 = vld [vmem:[%s3 + $0x78] sm:$0xff]
          %v925 = vld [vmem:[%s3 + $0x80] sm:$0xff]
          %v926 = vld [vmem:[%s3 + $0x88] sm:$0xff]
          %v927 = vld [vmem:[%s3 + $0x90] sm:$0xff]
          %v928 = vld [vmem:[%s3 + $0x98] sm:$0xff]
          %v929 = vld [vmem:[%s3 + $0xa0] sm:$0xff]
          %v930 = vld [vmem:[%s3 + $0xa8] sm:$0xff]
          %v931 = vld [vmem:[%s3 + $0xb0] sm:$0xff]
          %v932 = vld [vmem:[%s3 + $0xb8] sm:$0xff]
          %v933 = vld [vmem:[%s3 + $0xc0] sm:$0xff]
          %v934 = vld [vmem:[%s3 + $0xc8] sm:$0xff]
          %v935 = vld [vmem:[%s3 + $0xd0] sm:$0xff]
          %v936 = vld [vmem:[%s3 + $0xd8] sm:$0xff]
          %v937 = vld [vmem:[%s3 + $0xe0] sm:$0xff]
          %v938 = vld [vmem:[%s3 + $0xe8] sm:$0xff]
          %v939 = vld [vmem:[%s3 + $0xf0] sm:$0xff]
          %v940 = vld [vmem:[%s3 + $0xf8] sm:$0xff]
          %v941 = vld [vmem:[%s3 + $0x100] sm:$0xff]
          %v942 = vld [vmem:[%s3 + $0x108] sm:$0xff]
          %v943 = vld [vmem:[%s3 + $0x110] sm:$0xff]
          %v944 = vld [vmem:[%s3 + $0x118] sm:$0xff]
          %v945 = vld [vmem:[%s3 + $0x120] sm:$0xff]
          %v946 = vld [vmem:[%s3 + $0x128] sm:$0xff]
          %v947 = vld [vmem:[%s3 + $0x130] sm:$0xff]
          %v948 = vld [vmem:[%s3 + $0x138] sm:$0xff]
          %v949 = vld [vmem:[%s3 + $0x140] sm:$0xff]
          %v950 = vld [vmem:[%s3 + $0x148] sm:$0xff]
          %v951 = vld [vmem:[%s3 + $0x150] sm:$0xff]
          %v952 = vld [vmem:[%s3 + $0x158] sm:$0xff]
          %v953 = vld [vmem:[%s3 + $0x160] sm:$0xff]
          %v954 = vld [vmem:[%s3 + $0x168] sm:$0xff]
          %v955 = vld [vmem:[%s3 + $0x170] sm:$0xff]
          %v956 = vld [vmem:[%s3 + $0x178] sm:$0xff]
          %v957 = vld [vmem:[%s3 + $0x180] sm:$0xff]
          %v958 = vld [vmem:[%s3 + $0x188] sm:$0xff]
          %v959 = vld [vmem:[%s3 + $0x190] sm:$0xff]
          %v960 = vld [vmem:[%s3 + $0x198] sm:$0xff]
          %v961 = vld [vmem:[%s3 + $0x1a0] sm:$0xff]
          %v962 = vld [vmem:[%s3 + $0x1a8] sm:$0xff]
          %v963 = vld [vmem:[%s3 + $0x1b0] sm:$0xff]
          %v964 = vld [vmem:[%s3 + $0x1b8] sm:$0xff]
          %v965 = vld [vmem:[%s3 + $0x1c0] sm:$0xff]
          %v966 = vld [vmem:[%s3 + $0x1c8] sm:$0xff]
          %v967 = vld [vmem:[%s3 + $0x1d0] sm:$0xff]
          %v968 = vld [vmem:[%s3 + $0x1d8] sm:$0xff]
          %v969 = vld [vmem:[%s3 + $0x1e0] sm:$0xff]
          %v970 = vld [vmem:[%s3 + $0x1e8] sm:$0xff]
          %v971 = vld [vmem:[%s3 + $0x1f0] sm:$0xff]
          %v972 = vld [vmem:[%s3 + $0x1f8] sm:$0xff]
          %v973 = vld [vmem:[%s3 + $0x200] sm:$0xff]
          %v974 = vld [vmem:[%s3 + $0x208] sm:$0xff]
          %v975 = vld [vmem:[%s3 + $0x210] sm:$0xff]
          %v976 = vld [vmem:[%s3 + $0x218] sm:$0xff]
          %v977 = vld [vmem:[%s3 + $0x220] sm:$0xff]
          %v978 = vld [vmem:[%s3 + $0x228] sm:$0xff]
          %v979 = vld [vmem:[%s3 + $0x230] sm:$0xff]
          %v980 = vld [vmem:[%s3 + $0x238] sm:$0xff]
          %v981 = vld [vmem:[%s3 + $0x240] sm:$0xff]
          %v982 = vld [vmem:[%s3 + $0x248] sm:$0xff]
          %v983 = vld [vmem:[%s3 + $0x250] sm:$0xff]
          %v984 = vld [vmem:[%s3 + $0x258] sm:$0xff]
          %v985 = vld [vmem:[%s3 + $0x260] sm:$0xff]
          %v986 = vld [vmem:[%s3 + $0x268] sm:$0xff]
          %v987 = vld [vmem:[%s3 + $0x270] sm:$0xff]
          %v988 = vld [vmem:[%s3 + $0x278] sm:$0xff]
          %v989 = vld [vmem:[%s3 + $0x280] sm:$0xff]
          %v990 = vld [vmem:[%s3 + $0x288] sm:$0xff]
          %v991 = vld [vmem:[%s3 + $0x290] sm:$0xff]
          %v992 = vld [vmem:[%s3 + $0x298] sm:$0xff]
          %v993 = vld [vmem:[%s3 + $0x2a0] sm:$0xff]
          %v994 = vld [vmem:[%s3 + $0x2a8] sm:$0xff]
          %v995 = vld [vmem:[%s3 + $0x2b0] sm:$0xff]
          %v996 = vld [vmem:[%s3 + $0x2b8] sm:$0xff]
          %v997 = vld [vmem:[%s3 + $0x2c0] sm:$0xff]
          %v998 = vld [vmem:[%s3 + $0x2c8] sm:$0xff]
          %v999 = vld [vmem:[%s3 + $0x2d0] sm:$0xff]
          %v1000 = vld [vmem:[%s3 + $0x2d8] sm:$0xff]
          %v1001 = vld [vmem:[%s3 + $0x2e0] sm:$0xff]
          %v1002 = vld [vmem:[%s3 + $0x2e8] sm:$0xff]
          %v1003 = vld [vmem:[%s3 + $0x2f0] sm:$0xff]
          %v1004 = vld [vmem:[%s3 + $0x2f8] sm:$0xff]
          %v1005 = vld [vmem:[%s3 + $0x300] sm:$0xff]
          %v1006 = vld [vmem:[%s3 + $0x308] sm:$0xff]
          %v1007 = vld [vmem:[%s3 + $0x310] sm:$0xff]
          %v1008 = vld [vmem:[%s3 + $0x318] sm:$0xff]
          %v1009 = vld [vmem:[%s3 + $0x320] sm:$0xff]
          %v1010 = vld [vmem:[%s3 + $0x328] sm:$0xff]
          %v1011 = vld [vmem:[%s3 + $0x330] sm:$0xff]
          %v1012 = vld [vmem:[%s3 + $0x338] sm:$0xff]
          %v1013 = vld [vmem:[%s3 + $0x340] sm:$0xff]
          %v1014 = vld [vmem:[%s3 + $0x348] sm:$0xff]
          %v1015 = vld [vmem:[%s3 + $0x350] sm:$0xff]
          %v1016 = vld [vmem:[%s3 + $0x358] sm:$0xff]
          %v1017 = vld [vmem:[%s3 + $0x360] sm:$0xff]
          %v1018 = vld [vmem:[%s3 + $0x368] sm:$0xff]
          %v1019 = vld [vmem:[%s3 + $0x370] sm:$0xff]
          %v1020 = vld [vmem:[%s3 + $0x378] sm:$0xff]
          %v1021 = vld [vmem:[%s3 + $0x380] sm:$0xff]
          %v1022 = vld [vmem:[%s3 + $0x388] sm:$0xff]
          %v1023 = vld [vmem:[%s3 + $0x390] sm:$0xff]
          %v1024 = vld [vmem:[%s3 + $0x398] sm:$0xff]
          %v1025 = vld [vmem:[%s3 + $0x3a0] sm:$0xff]
          %v1026 = vld [vmem:[%s3 + $0x3a8] sm:$0xff]
          %v1027 = vld [vmem:[%s3 + $0x3b0] sm:$0xff]
          %v1028 = vld [vmem:[%s3 + $0x3b8] sm:$0xff]
          %v1029 = vld [vmem:[%s3 + $0x3c0] sm:$0xff]
          %v1030 = vld [vmem:[%s3 + $0x3c8] sm:$0xff]
          %v1031 = vld [vmem:[%s3 + $0x3d0] sm:$0xff]
          %v1032 = vld [vmem:[%s3 + $0x3d8] sm:$0xff]
          %v1033 = vld [vmem:[%s3 + $0x3e0] sm:$0xff]
          %v1034 = vld [vmem:[%s3 + $0x3e8] sm:$0xff]
          %v1035 = vld [vmem:[%s3 + $0x3f0] sm:$0xff]
          %v1036 = vld [vmem:[%s3 + $0x3f8] sm:$0xff]
          %1037 = vmatprep.subr.mxu0 %v940
          %1038 = vmatpush1.msra.mxu0 %v939
          %1039 = vmatprep.subr.mxu0 %v938
          %1040 = vmatpush1.msra.mxu0 %v937
          %1041 = vmatprep.subr.mxu0 %v936
          %1042 = vmatpush1.msra.mxu0 %v935
          %1043 = vmatprep.subr.mxu0 %v934
          %1044 = vmatpush1.msra.mxu0 %v933
          %1045 = vmatprep.subr.mxu0 %v932
          %1046 = vmatpush1.msra.mxu0 %v931
          %1047 = vmatprep.subr.mxu0 %v930
          %1048 = vmatpush1.msra.mxu0 %v929
          %1049 = vmatprep.subr.mxu0 %v928
          %1050 = vmatpush1.msra.mxu0 %v927
          %1051 = vmatprep.subr.mxu0 %v926
          %1052 = vmatpush1.msra.mxu0 %v925
          %1053 = vmatprep.subr.mxu0 %v924
          %1054 = vmatpush1.msra.mxu0 %v923
          %1055 = vmatprep.subr.mxu0 %v922
          %1056 = vmatpush1.msra.mxu0 %v921
          %1057 = vmatprep.subr.mxu0 %v920
          %1058 = vmatpush1.msra.mxu0 %v919
          %1059 = vmatprep.subr.mxu0 %v918
          %1060 = vmatpush1.msra.mxu0 %v917
          %1061 = vmatprep.subr.mxu0 %v916
          %1062 = vmatpush1.msra.mxu0 %v915
          %1063 = vmatprep.subr.mxu0 %v914
          %1064 = vmatpush1.msra.mxu0 %v913
          %1065 = vmatprep.subr.mxu0 %v912
          %1066 = vmatpush1.msra.mxu0 %v911
          %1067 = vmatprep.subr.mxu0 %v910
          %1068 = vmatpush1.msra.mxu0 %v909
          %1069 = vmatprep.subr.mxu0 %v972
          %1070 = vmatpush2.msra.mxu0 %v971
          %1071 = vmatprep.subr.mxu0 %v970
          %1072 = vmatpush2.msra.mxu0 %v969
          %1073 = vmatprep.subr.mxu0 %v968
          %1074 = vmatpush2.msra.mxu0 %v967
          %1075 = vmatprep.subr.mxu0 %v966
          %1076 = vmatpush2.msra.mxu0 %v965
          %1077 = vmatprep.subr.mxu0 %v964
          %1078 = vmatpush2.msra.mxu0 %v963
          %1079 = vmatprep.subr.mxu0 %v962
          %1080 = vmatpush2.msra.mxu0 %v961
          %1081 = vmatprep.subr.mxu0 %v960
          %1082 = vmatpush2.msra.mxu0 %v959
          %1083 = vmatprep.subr.mxu0 %v958
          %1084 = vmatpush2.msra.mxu0 %v957
          %1085 = vmatprep.subr.mxu0 %v956
          %1086 = vmatpush2.msra.mxu0 %v955
          %1087 = vmatprep.subr.mxu0 %v954
          %1088 = vmatpush2.msra.mxu0 %v953
          %1089 = vmatprep.subr.mxu0 %v952
          %1090 = vmatpush2.msra.mxu0 %v951
          %1091 = vmatprep.subr.mxu0 %v950
          %1092 = vmatpush2.msra.mxu0 %v949
          %1093 = vmatprep.subr.mxu0 %v948
          %1094 = vmatpush2.msra.mxu0 %v947
          %1095 = vmatprep.subr.mxu0 %v946
          %1096 = vmatpush2.msra.mxu0 %v945
          %1097 = vmatprep.subr.mxu0 %v944
          %1098 = vmatpush2.msra.mxu0 %v943
          %1099 = vmatprep.subr.mxu0 %v942
          %1100 = vmatpush2.msra.mxu0 %v941
          %1101 = vmatprep.mubr.f32.mxu0 %v902
          %1102 = vmatmul.mubr.f32.gmra.mxu0 %v901
          %v1103 = vpop.f32.mrf.mxu0
          %v1104 = vadd.f32 0.0, %v1103
          %v1105 = vpop.f32.mrf.mxu0
          %v1106 = vadd.f32 0.0, %v1105
          %1107 = vmatprep.mubr.f32.mxu0 %v906
          %1108 = vmatmul.mubr.f32.gmra.mxu0 %v905
          %v1109 = vpop.f32.mrf.mxu0
          %v1110 = vadd.f32 0.0, %v1109
          %v1111 = vpop.f32.mrf.mxu0
          %v1112 = vadd.f32 0.0, %v1111
          %1113 = vdwg.mxu0
          %1114 = vmatprep.subr.mxu0 %v1004
          %1115 = vmatpush1.msra.mxu0 %v1003
          %1116 = vmatprep.subr.mxu0 %v1002
          %1117 = vmatpush1.msra.mxu0 %v1001
          %1118 = vmatprep.subr.mxu0 %v1000
          %1119 = vmatpush1.msra.mxu0 %v999
          %1120 = vmatprep.subr.mxu0 %v998
          %1121 = vmatpush1.msra.mxu0 %v997
          %1122 = vmatprep.subr.mxu0 %v996
          %1123 = vmatpush1.msra.mxu0 %v995
          %1124 = vmatprep.subr.mxu0 %v994
          %1125 = vmatpush1.msra.mxu0 %v993
          %1126 = vmatprep.subr.mxu0 %v992
          %1127 = vmatpush1.msra.mxu0 %v991
          %1128 = vmatprep.subr.mxu0 %v990
          %1129 = vmatpush1.msra.mxu0 %v989
          %1130 = vmatprep.subr.mxu0 %v988
          %1131 = vmatpush1.msra.mxu0 %v987
          %1132 = vmatprep.subr.mxu0 %v986
          %1133 = vmatpush1.msra.mxu0 %v985
          %1134 = vmatprep.subr.mxu0 %v984
          %1135 = vmatpush1.msra.mxu0 %v983
          %1136 = vmatprep.subr.mxu0 %v982
          %1137 = vmatpush1.msra.mxu0 %v981
          %1138 = vmatprep.subr.mxu0 %v980
          %1139 = vmatpush1.msra.mxu0 %v979
          %1140 = vmatprep.subr.mxu0 %v978
          %1141 = vmatpush1.msra.mxu0 %v977
          %1142 = vmatprep.subr.mxu0 %v976
          %1143 = vmatpush1.msra.mxu0 %v975
          %1144 = vmatprep.subr.mxu0 %v974
          %1145 = vmatpush1.msra.mxu0 %v973
          %1146 = vmatprep.subr.mxu0 %v1036
          %1147 = vmatpush2.msra.mxu0 %v1035
          %1148 = vmatprep.subr.mxu0 %v1034
          %1149 = vmatpush2.msra.mxu0 %v1033
          %1150 = vmatprep.subr.mxu0 %v1032
          %1151 = vmatpush2.msra.mxu0 %v1031
          %1152 = vmatprep.subr.mxu0 %v1030
          %1153 = vmatpush2.msra.mxu0 %v1029
          %1154 = vmatprep.subr.mxu0 %v1028
          %1155 = vmatpush2.msra.mxu0 %v1027
          %1156 = vmatprep.subr.mxu0 %v1026
          %1157 = vmatpush2.msra.mxu0 %v1025
          %1158 = vmatprep.subr.mxu0 %v1024
          %1159 = vmatpush2.msra.mxu0 %v1023
          %1160 = vmatprep.subr.mxu0 %v1022
          %1161 = vmatpush2.msra.mxu0 %v1021
          %1162 = vmatprep.subr.mxu0 %v1020
          %1163 = vmatpush2.msra.mxu0 %v1019
          %1164 = vmatprep.subr.mxu0 %v1018
          %1165 = vmatpush2.msra.mxu0 %v1017
          %1166 = vmatprep.subr.mxu0 %v1016
          %1167 = vmatpush2.msra.mxu0 %v1015
          %1168 = vmatprep.subr.mxu0 %v1014
          %1169 = vmatpush2.msra.mxu0 %v1013
          %1170 = vmatprep.subr.mxu0 %v1012
          %1171 = vmatpush2.msra.mxu0 %v1011
          %1172 = vmatprep.subr.mxu0 %v1010
          %1173 = vmatpush2.msra.mxu0 %v1009
          %1174 = vmatprep.subr.mxu0 %v1008
          %1175 = vmatpush2.msra.mxu0 %v1007
          %1176 = vmatprep.subr.mxu0 %v1006
          %1177 = vmatpush2.msra.mxu0 %v1005
          %1178 = vmatprep.mubr.f32.mxu0 %v904
          %1179 = vmatmul.mubr.f32.gmra.mxu0 %v903
          %v1180 = vpop.f32.mrf.mxu0
          %v1181 = vadd.f32 %v1104, %v1180
          %v1182 = vpop.f32.mrf.mxu0
          %v1183 = vadd.f32 %v1106, %v1182
          %1184 = vmatprep.mubr.f32.mxu0 %v908
          %1185 = vmatmul.mubr.f32.gmra.mxu0 %v907
          %v1186 = vpop.f32.mrf.mxu0
          %v1187 = vadd.f32 %v1110, %v1186
          %v1188 = vpop.f32.mrf.mxu0
          %v1189 = vadd.f32 %v1112, %v1188
          %1190 = vdwg.mxu0
          %vm1191 = vcmask 1043456
          %v1192 = vsel %vm1191, %v1187, 0.0
          %v1193 = vadd.f32 %v1181, %v1192
          %v1194 = vrot.slane %v1193, 4
          %v1195 = vadd.f32 %v1193, %v1194
          %v1196 = vrot.slane %v1195, 2
          %v1197 = vadd.f32 %v1195, %v1196
          %v1198 = vrot.slane %v1197, 1
          %v1199 = vadd.f32 %v1197, %v1198
          %v1200 = vsel %vm1191, %v1189, 0.0
          %v1201 = vadd.f32 %v1183, %v1200
          %v1202 = vrot.slane %v1201, 4
          %v1203 = vadd.f32 %v1201, %v1202
          %v1204 = vrot.slane %v1203, 2
          %v1205 = vadd.f32 %v1203, %v1204
          %v1206 = vrot.slane %v1205, 1
          %v1207 = vadd.f32 %v1205, %v1206
          %v1208 = vrcp.pop 12.0
          %v1209 = vmul.f32 %v1199, %v1208
          %v1210 = vmul.f32 %v1207, %v1208
          %v1211 = vsub.f32 %v1181, %v1209
          %v1212 = vsub.f32 %v1183, %v1210
          %v1213 = vsub.f32 %v1187, %v1209
          %v1214 = vsub.f32 %v1189, %v1210
          %v1215 = vmul.f32 %v1211, %v1211
          %v1216 = vmul.f32 %v1212, %v1212
          %v1217 = vmul.f32 %v1213, %v1213
          %v1218 = vmul.f32 %v1214, %v1214
          %v1219 = vsel %vm1191, %v1217, 0.0
          %v1220 = vadd.f32 %v1215, %v1219
          %v1221 = vrot.slane %v1220, 4
          %v1222 = vadd.f32 %v1220, %v1221
          %v1223 = vrot.slane %v1222, 2
          %v1224 = vadd.f32 %v1222, %v1223
          %v1225 = vrot.slane %v1224, 1
          %v1226 = vadd.f32 %v1224, %v1225
          %v1227 = vsel %vm1191, %v1218, 0.0
          %v1228 = vadd.f32 %v1216, %v1227
          %v1229 = vrot.slane %v1228, 4
          %v1230 = vadd.f32 %v1228, %v1229
          %v1231 = vrot.slane %v1230, 2
          %v1232 = vadd.f32 %v1230, %v1231
          %v1233 = vrot.slane %v1232, 1
          %v1234 = vadd.f32 %v1232, %v1233
          %v1235 = vmul.f32 %v1226, %v1208
          %v1236 = vmul.f32 %v1234, %v1208
          %v1237 = vadd.f32 %v1235, 1e-05
          %v1238 = vadd.f32 %v1236, 1e-05
          %v1239 = vrsqrt.pop %v1237
          %v1240 = vrsqrt.pop %v1238
          %v1241 = vmul.f32 %v1211, %v1239
          %v1242 = vmul.f32 %v1212, %v1240
          %v1243 = vmul.f32 %v1213, %v1239
          %v1244 = vmul.f32 %v1214, %v1240
          %v1245 = vld [vmem:[%s4] sm:$0x3]
          %v1247 = vlaneseq
          %v1248 = vshrl.u32 %v1247, 7
          %v1249 = vsub.s32 0, %v1248
          %v1250 = vrot.slane %v1245, %v1249
          %v1251 = vlaneseq
          %v1252 = vshrl.u32 %v1251, 7
          %v1253 = vsub.s32 1, %v1252
          %v1254 = vrot.slane %v1245, %v1253
          %v1257 = vmul.f32 %v1241, %v1250
          %v1258 = vmul.f32 %v1242, %v1254
          %v1259 = vmul.f32 %v1243, %v1250
          %v1260 = vmul.f32 %v1244, %v1254
          %v1261 = vld [vmem:[%s5] sm:$0x3]
          %v1263 = vlaneseq
          %v1264 = vshrl.u32 %v1263, 7
          %v1265 = vsub.s32 0, %v1264
          %v1266 = vrot.slane %v1261, %v1265
          %v1267 = vlaneseq
          %v1268 = vshrl.u32 %v1267, 7
          %v1269 = vsub.s32 1, %v1268
          %v1270 = vrot.slane %v1261, %v1269
          %v1273 = vadd.f32 %v1257, %v1266
          %v1274 = vadd.f32 %v1258, %v1270
          %v1275 = vadd.f32 %v1259, %v1266
          %v1276 = vadd.f32 %v1260, %v1270
          %v1277 = vmax.f32 %v1273, 0.0
          %v1278 = vmax.f32 %v1274, 0.0
          %v1279 = vmax.f32 %v1275, 0.0
          %v1280 = vmax.f32 %v1276, 0.0
          %v1281 = vld [vmem:[#allocation2] sm:$0xff]
          %v1282 = vld [vmem:[#allocation2 + $0x8] sm:$0xff]
          %v1283 = vld [vmem:[#allocation2 + $0x10] sm:$0xff]
          %v1284 = vld [vmem:[#allocation2 + $0x18] sm:$0xff]
          %v1285 = vld [vmem:[#allocation2 + $0x20] sm:$0xff]
          %v1286 = vld [vmem:[#allocation2 + $0x28] sm:$0xff]
          %v1287 = vld [vmem:[#allocation2 + $0x30] sm:$0xff]
          %v1288 = vld [vmem:[#allocation2 + $0x38] sm:$0xff]
          %v1289 = vld [vmem:[#allocation2 + $0x40] sm:$0xff]
          %v1290 = vld [vmem:[#allocation2 + $0x48] sm:$0xff]
          %v1291 = vld [vmem:[#allocation2 + $0x50] sm:$0xff]
          %v1292 = vld [vmem:[#allocation2 + $0x58] sm:$0xff]
          %v1293 = vld [vmem:[#allocation2 + $0x60] sm:$0xff]
          %v1294 = vld [vmem:[#allocation2 + $0x68] sm:$0xff]
          %v1295 = vld [vmem:[#allocation2 + $0x70] sm:$0xff]
          %v1296 = vld [vmem:[#allocation2 + $0x78] sm:$0xff]
          %v1297 = vld [vmem:[#allocation2 + $0x80] sm:$0xff]
          %v1298 = vld [vmem:[#allocation2 + $0x88] sm:$0xff]
          %v1299 = vld [vmem:[#allocation2 + $0x90] sm:$0xff]
          %v1300 = vld [vmem:[#allocation2 + $0x98] sm:$0xff]
          %v1301 = vld [vmem:[#allocation2 + $0xa0] sm:$0xff]
          %v1302 = vld [vmem:[#allocation2 + $0xa8] sm:$0xff]
          %v1303 = vld [vmem:[#allocation2 + $0xb0] sm:$0xff]
          %v1304 = vld [vmem:[#allocation2 + $0xb8] sm:$0xff]
          %v1305 = vld [vmem:[#allocation2 + $0xc0] sm:$0xff]
          %v1306 = vld [vmem:[#allocation2 + $0xc8] sm:$0xff]
          %v1307 = vld [vmem:[#allocation2 + $0xd0] sm:$0xff]
          %v1308 = vld [vmem:[#allocation2 + $0xd8] sm:$0xff]
          %v1309 = vld [vmem:[#allocation2 + $0xe0] sm:$0xff]
          %v1310 = vld [vmem:[#allocation2 + $0xe8] sm:$0xff]
          %v1311 = vld [vmem:[#allocation2 + $0xf0] sm:$0xff]
          %v1312 = vld [vmem:[#allocation2 + $0xf8] sm:$0xff]
          %v1313 = vld [vmem:[%s7] sm:$0x1]
          %v1315 = vlaneseq
          %v1316 = vshrl.u32 %v1315, 7
          %v1317 = vsub.s32 0, %v1316
          %v1318 = vrot.slane %v1313, %v1317
          %1320 = vmatprep.subr.mxu0 0.0
          %1321 = vmatpush1.msra.mxu0 %v1296
          %1322 = vmatprep.subr.mxu0 0.0
          %1323 = vmatpush1.msra.mxu0 %v1295
          %1324 = vmatprep.subr.mxu0 0.0
          %1325 = vmatpush1.msra.mxu0 %v1294
          %1326 = vmatprep.subr.mxu0 0.0
          %1327 = vmatpush1.msra.mxu0 %v1293
          %1328 = vmatprep.subr.mxu0 0.0
          %1329 = vmatpush1.msra.mxu0 %v1292
          %1330 = vmatprep.subr.mxu0 0.0
          %1331 = vmatpush1.msra.mxu0 %v1291
          %1332 = vmatprep.subr.mxu0 0.0
          %1333 = vmatpush1.msra.mxu0 %v1290
          %1334 = vmatprep.subr.mxu0 0.0
          %1335 = vmatpush1.msra.mxu0 %v1289
          %1336 = vmatprep.subr.mxu0 0.0
          %1337 = vmatpush1.msra.mxu0 %v1288
          %1338 = vmatprep.subr.mxu0 0.0
          %1339 = vmatpush1.msra.mxu0 %v1287
          %1340 = vmatprep.subr.mxu0 0.0
          %1341 = vmatpush1.msra.mxu0 %v1286
          %1342 = vmatprep.subr.mxu0 0.0
          %1343 = vmatpush1.msra.mxu0 %v1285
          %1344 = vmatprep.subr.mxu0 0.0
          %1345 = vmatpush1.msra.mxu0 %v1284
          %1346 = vmatprep.subr.mxu0 0.0
          %1347 = vmatpush1.msra.mxu0 %v1283
          %1348 = vmatprep.subr.mxu0 0.0
          %1349 = vmatpush1.msra.mxu0 %v1282
          %1350 = vmatprep.subr.mxu0 0.0
          %1351 = vmatpush1.msra.mxu0 %v1281
          %1352 = vmatprep.subr.mxu0 0.0
          %1353 = vmatpush2.msra.mxu0 %v1312
          %1354 = vmatprep.subr.mxu0 0.0
          %1355 = vmatpush2.msra.mxu0 %v1311
          %1356 = vmatprep.subr.mxu0 0.0
          %1357 = vmatpush2.msra.mxu0 %v1310
          %1358 = vmatprep.subr.mxu0 0.0
          %1359 = vmatpush2.msra.mxu0 %v1309
          %1360 = vmatprep.subr.mxu0 0.0
          %1361 = vmatpush2.msra.mxu0 %v1308
          %1362 = vmatprep.subr.mxu0 0.0
          %1363 = vmatpush2.msra.mxu0 %v1307
          %1364 = vmatprep.subr.mxu0 0.0
          %1365 = vmatpush2.msra.mxu0 %v1306
          %1366 = vmatprep.subr.mxu0 0.0
          %1367 = vmatpush2.msra.mxu0 %v1305
          %1368 = vmatprep.subr.mxu0 0.0
          %1369 = vmatpush2.msra.mxu0 %v1304
          %1370 = vmatprep.subr.mxu0 0.0
          %1371 = vmatpush2.msra.mxu0 %v1303
          %1372 = vmatprep.subr.mxu0 0.0
          %1373 = vmatpush2.msra.mxu0 %v1302
          %1374 = vmatprep.subr.mxu0 0.0
          %1375 = vmatpush2.msra.mxu0 %v1301
          %1376 = vmatprep.subr.mxu0 0.0
          %1377 = vmatpush2.msra.mxu0 %v1300
          %1378 = vmatprep.subr.mxu0 0.0
          %1379 = vmatpush2.msra.mxu0 %v1299
          %1380 = vmatprep.subr.mxu0 0.0
          %1381 = vmatpush2.msra.mxu0 %v1298
          %1382 = vmatprep.subr.mxu0 0.0
          %1383 = vmatpush2.msra.mxu0 %v1297
          %1384 = vmatprep.mubr.f32.mxu0 %v1278
          %1385 = vmatmul.mubr.f32.gmra.mxu0 %v1277
          %v1386 = vpop.f32.mrf.mxu0
          %v1387 = vadd.f32 %v1318, %v1386
          %v1388 = vpop.f32.mrf.mxu0
          %1389 = vdwg.mxu0
          %1390 = vst [vmem:[#allocation6] sm:$0x3] %v1387
          %s1391 = scalar_lea.vmem [#allocation2], 256
          %v1392 = vld [vmem:[%s1391] sm:$0xff]
          %v1393 = vld [vmem:[%s1391 + $0x8] sm:$0xff]
          %v1394 = vld [vmem:[%s1391 + $0x10] sm:$0xff]
          %v1395 = vld [vmem:[%s1391 + $0x18] sm:$0xff]
          %v1396 = vld [vmem:[%s1391 + $0x20] sm:$0xff]
          %v1397 = vld [vmem:[%s1391 + $0x28] sm:$0xff]
          %v1398 = vld [vmem:[%s1391 + $0x30] sm:$0xff]
          %v1399 = vld [vmem:[%s1391 + $0x38] sm:$0xff]
          %v1400 = vld [vmem:[%s1391 + $0x40] sm:$0xff]
          %v1401 = vld [vmem:[%s1391 + $0x48] sm:$0xff]
          %v1402 = vld [vmem:[%s1391 + $0x50] sm:$0xff]
          %v1403 = vld [vmem:[%s1391 + $0x58] sm:$0xff]
          %v1404 = vld [vmem:[%s1391 + $0x60] sm:$0xff]
          %v1405 = vld [vmem:[%s1391 + $0x68] sm:$0xff]
          %v1406 = vld [vmem:[%s1391 + $0x70] sm:$0xff]
          %v1407 = vld [vmem:[%s1391 + $0x78] sm:$0xff]
          %v1408 = vld [vmem:[%s1391 + $0x80] sm:$0xff]
          %v1409 = vld [vmem:[%s1391 + $0x88] sm:$0xff]
          %v1410 = vld [vmem:[%s1391 + $0x90] sm:$0xff]
          %v1411 = vld [vmem:[%s1391 + $0x98] sm:$0xff]
          %v1412 = vld [vmem:[%s1391 + $0xa0] sm:$0xff]
          %v1413 = vld [vmem:[%s1391 + $0xa8] sm:$0xff]
          %v1414 = vld [vmem:[%s1391 + $0xb0] sm:$0xff]
          %v1415 = vld [vmem:[%s1391 + $0xb8] sm:$0xff]
          %v1416 = vld [vmem:[%s1391 + $0xc0] sm:$0xff]
          %v1417 = vld [vmem:[%s1391 + $0xc8] sm:$0xff]
          %v1418 = vld [vmem:[%s1391 + $0xd0] sm:$0xff]
          %v1419 = vld [vmem:[%s1391 + $0xd8] sm:$0xff]
          %v1420 = vld [vmem:[%s1391 + $0xe0] sm:$0xff]
          %v1421 = vld [vmem:[%s1391 + $0xe8] sm:$0xff]
          %v1422 = vld [vmem:[%s1391 + $0xf0] sm:$0xff]
          %v1423 = vld [vmem:[%s1391 + $0xf8] sm:$0xff]
          %s1424 = scalar_lea.vmem %s7, 1
          %v1425 = vld [vmem:[%s1424] sm:$0x1]
          %v1427 = vlaneseq
          %v1428 = vshrl.u32 %v1427, 7
          %v1429 = vsub.s32 0, %v1428
          %v1430 = vrot.slane %v1425, %v1429
          %v1434 = vrot.slane %v1277, 2
          %v1435 = vrot.slane %v1278, 2
          %1438 = vmatprep.subr.mxu0 0.0
          %1439 = vmatpush1.msra.mxu0 %v1407
          %1440 = vmatprep.subr.mxu0 0.0
          %1441 = vmatpush1.msra.mxu0 %v1406
          %1442 = vmatprep.subr.mxu0 0.0
          %1443 = vmatpush1.msra.mxu0 %v1405
          %1444 = vmatprep.subr.mxu0 0.0
          %1445 = vmatpush1.msra.mxu0 %v1404
          %1446 = vmatprep.subr.mxu0 0.0
          %1447 = vmatpush1.msra.mxu0 %v1403
          %1448 = vmatprep.subr.mxu0 0.0
          %1449 = vmatpush1.msra.mxu0 %v1402
          %1450 = vmatprep.subr.mxu0 0.0
          %1451 = vmatpush1.msra.mxu0 %v1401
          %1452 = vmatprep.subr.mxu0 0.0
          %1453 = vmatpush1.msra.mxu0 %v1400
          %1454 = vmatprep.subr.mxu0 0.0
          %1455 = vmatpush1.msra.mxu0 %v1399
          %1456 = vmatprep.subr.mxu0 0.0
          %1457 = vmatpush1.msra.mxu0 %v1398
          %1458 = vmatprep.subr.mxu0 0.0
          %1459 = vmatpush1.msra.mxu0 %v1397
          %1460 = vmatprep.subr.mxu0 0.0
          %1461 = vmatpush1.msra.mxu0 %v1396
          %1462 = vmatprep.subr.mxu0 0.0
          %1463 = vmatpush1.msra.mxu0 %v1395
          %1464 = vmatprep.subr.mxu0 0.0
          %1465 = vmatpush1.msra.mxu0 %v1394
          %1466 = vmatprep.subr.mxu0 0.0
          %1467 = vmatpush1.msra.mxu0 %v1393
          %1468 = vmatprep.subr.mxu0 0.0
          %1469 = vmatpush1.msra.mxu0 %v1392
          %1470 = vmatprep.subr.mxu0 0.0
          %1471 = vmatpush2.msra.mxu0 %v1423
          %1472 = vmatprep.subr.mxu0 0.0
          %1473 = vmatpush2.msra.mxu0 %v1422
          %1474 = vmatprep.subr.mxu0 0.0
          %1475 = vmatpush2.msra.mxu0 %v1421
          %1476 = vmatprep.subr.mxu0 0.0
          %1477 = vmatpush2.msra.mxu0 %v1420
          %1478 = vmatprep.subr.mxu0 0.0
          %1479 = vmatpush2.msra.mxu0 %v1419
          %1480 = vmatprep.subr.mxu0 0.0
          %1481 = vmatpush2.msra.mxu0 %v1418
          %1482 = vmatprep.subr.mxu0 0.0
          %1483 = vmatpush2.msra.mxu0 %v1417
          %1484 = vmatprep.subr.mxu0 0.0
          %1485 = vmatpush2.msra.mxu0 %v1416
          %1486 = vmatprep.subr.mxu0 0.0
          %1487 = vmatpush2.msra.mxu0 %v1415
          %1488 = vmatprep.subr.mxu0 0.0
          %1489 = vmatpush2.msra.mxu0 %v1414
          %1490 = vmatprep.subr.mxu0 0.0
          %1491 = vmatpush2.msra.mxu0 %v1413
          %1492 = vmatprep.subr.mxu0 0.0
          %1493 = vmatpush2.msra.mxu0 %v1412
          %1494 = vmatprep.subr.mxu0 0.0
          %1495 = vmatpush2.msra.mxu0 %v1411
          %1496 = vmatprep.subr.mxu0 0.0
          %1497 = vmatpush2.msra.mxu0 %v1410
          %1498 = vmatprep.subr.mxu0 0.0
          %1499 = vmatpush2.msra.mxu0 %v1409
          %1500 = vmatprep.subr.mxu0 0.0
          %1501 = vmatpush2.msra.mxu0 %v1408
          %1502 = vmatprep.mubr.f32.mxu0 %v1435
          %1503 = vmatmul.mubr.f32.gmra.mxu0 %v1434
          %v1504 = vpop.f32.mrf.mxu0
          %v1505 = vadd.f32 %v1430, %v1504
          %v1506 = vpop.f32.mrf.mxu0
          %1507 = vdwg.mxu0
          %s1508 = scalar_lea.vmem [#allocation6], 2
          %1509 = vst [vmem:[%s1508] sm:$0x3] %v1505
          %s1510 = scalar_lea.vmem [#allocation2], 512
          %v1511 = vld [vmem:[%s1510] sm:$0xff]
          %v1512 = vld [vmem:[%s1510 + $0x8] sm:$0xff]
          %v1513 = vld [vmem:[%s1510 + $0x10] sm:$0xff]
          %v1514 = vld [vmem:[%s1510 + $0x18] sm:$0xff]
          %v1515 = vld [vmem:[%s1510 + $0x20] sm:$0xff]
          %v1516 = vld [vmem:[%s1510 + $0x28] sm:$0xff]
          %v1517 = vld [vmem:[%s1510 + $0x30] sm:$0xff]
          %v1518 = vld [vmem:[%s1510 + $0x38] sm:$0xff]
          %v1519 = vld [vmem:[%s1510 + $0x40] sm:$0xff]
          %v1520 = vld [vmem:[%s1510 + $0x48] sm:$0xff]
          %v1521 = vld [vmem:[%s1510 + $0x50] sm:$0xff]
          %v1522 = vld [vmem:[%s1510 + $0x58] sm:$0xff]
          %v1523 = vld [vmem:[%s1510 + $0x60] sm:$0xff]
          %v1524 = vld [vmem:[%s1510 + $0x68] sm:$0xff]
          %v1525 = vld [vmem:[%s1510 + $0x70] sm:$0xff]
          %v1526 = vld [vmem:[%s1510 + $0x78] sm:$0xff]
          %v1527 = vld [vmem:[%s1510 + $0x80] sm:$0xff]
          %v1528 = vld [vmem:[%s1510 + $0x88] sm:$0xff]
          %v1529 = vld [vmem:[%s1510 + $0x90] sm:$0xff]
          %v1530 = vld [vmem:[%s1510 + $0x98] sm:$0xff]
          %v1531 = vld [vmem:[%s1510 + $0xa0] sm:$0xff]
          %v1532 = vld [vmem:[%s1510 + $0xa8] sm:$0xff]
          %v1533 = vld [vmem:[%s1510 + $0xb0] sm:$0xff]
          %v1534 = vld [vmem:[%s1510 + $0xb8] sm:$0xff]
          %v1535 = vld [vmem:[%s1510 + $0xc0] sm:$0xff]
          %v1536 = vld [vmem:[%s1510 + $0xc8] sm:$0xff]
          %v1537 = vld [vmem:[%s1510 + $0xd0] sm:$0xff]
          %v1538 = vld [vmem:[%s1510 + $0xd8] sm:$0xff]
          %v1539 = vld [vmem:[%s1510 + $0xe0] sm:$0xff]
          %v1540 = vld [vmem:[%s1510 + $0xe8] sm:$0xff]
          %v1541 = vld [vmem:[%s1510 + $0xf0] sm:$0xff]
          %v1542 = vld [vmem:[%s1510 + $0xf8] sm:$0xff]
          %s1543 = scalar_lea.vmem %s7, 2
          %v1544 = vld [vmem:[%s1543] sm:$0x1]
          %v1546 = vlaneseq
          %v1547 = vshrl.u32 %v1546, 7
          %v1548 = vsub.s32 0, %v1547
          %v1549 = vrot.slane %v1544, %v1548
          %v1551 = vrot.slane %v1277, 4
          %v1552 = vrot.slane %v1278, 4
          %1555 = vmatprep.subr.mxu0 0.0
          %1556 = vmatpush1.msra.mxu0 %v1526
          %1557 = vmatprep.subr.mxu0 0.0
          %1558 = vmatpush1.msra.mxu0 %v1525
          %1559 = vmatprep.subr.mxu0 0.0
          %1560 = vmatpush1.msra.mxu0 %v1524
          %1561 = vmatprep.subr.mxu0 0.0
          %1562 = vmatpush1.msra.mxu0 %v1523
          %1563 = vmatprep.subr.mxu0 0.0
          %1564 = vmatpush1.msra.mxu0 %v1522
          %1565 = vmatprep.subr.mxu0 0.0
          %1566 = vmatpush1.msra.mxu0 %v1521
          %1567 = vmatprep.subr.mxu0 0.0
          %1568 = vmatpush1.msra.mxu0 %v1520
          %1569 = vmatprep.subr.mxu0 0.0
          %1570 = vmatpush1.msra.mxu0 %v1519
          %1571 = vmatprep.subr.mxu0 0.0
          %1572 = vmatpush1.msra.mxu0 %v1518
          %1573 = vmatprep.subr.mxu0 0.0
          %1574 = vmatpush1.msra.mxu0 %v1517
          %1575 = vmatprep.subr.mxu0 0.0
          %1576 = vmatpush1.msra.mxu0 %v1516
          %1577 = vmatprep.subr.mxu0 0.0
          %1578 = vmatpush1.msra.mxu0 %v1515
          %1579 = vmatprep.subr.mxu0 0.0
          %1580 = vmatpush1.msra.mxu0 %v1514
          %1581 = vmatprep.subr.mxu0 0.0
          %1582 = vmatpush1.msra.mxu0 %v1513
          %1583 = vmatprep.subr.mxu0 0.0
          %1584 = vmatpush1.msra.mxu0 %v1512
          %1585 = vmatprep.subr.mxu0 0.0
          %1586 = vmatpush1.msra.mxu0 %v1511
          %1587 = vmatprep.subr.mxu0 0.0
          %1588 = vmatpush2.msra.mxu0 %v1542
          %1589 = vmatprep.subr.mxu0 0.0
          %1590 = vmatpush2.msra.mxu0 %v1541
          %1591 = vmatprep.subr.mxu0 0.0
          %1592 = vmatpush2.msra.mxu0 %v1540
          %1593 = vmatprep.subr.mxu0 0.0
          %1594 = vmatpush2.msra.mxu0 %v1539
          %1595 = vmatprep.subr.mxu0 0.0
          %1596 = vmatpush2.msra.mxu0 %v1538
          %1597 = vmatprep.subr.mxu0 0.0
          %1598 = vmatpush2.msra.mxu0 %v1537
          %1599 = vmatprep.subr.mxu0 0.0
          %1600 = vmatpush2.msra.mxu0 %v1536
          %1601 = vmatprep.subr.mxu0 0.0
          %1602 = vmatpush2.msra.mxu0 %v1535
          %1603 = vmatprep.subr.mxu0 0.0
          %1604 = vmatpush2.msra.mxu0 %v1534
          %1605 = vmatprep.subr.mxu0 0.0
          %1606 = vmatpush2.msra.mxu0 %v1533
          %1607 = vmatprep.subr.mxu0 0.0
          %1608 = vmatpush2.msra.mxu0 %v1532
          %1609 = vmatprep.subr.mxu0 0.0
          %1610 = vmatpush2.msra.mxu0 %v1531
          %1611 = vmatprep.subr.mxu0 0.0
          %1612 = vmatpush2.msra.mxu0 %v1530
          %1613 = vmatprep.subr.mxu0 0.0
          %1614 = vmatpush2.msra.mxu0 %v1529
          %1615 = vmatprep.subr.mxu0 0.0
          %1616 = vmatpush2.msra.mxu0 %v1528
          %1617 = vmatprep.subr.mxu0 0.0
          %1618 = vmatpush2.msra.mxu0 %v1527
          %1619 = vmatprep.mubr.f32.mxu0 %v1552
          %1620 = vmatmul.mubr.f32.gmra.mxu0 %v1551
          %v1621 = vpop.f32.mrf.mxu0
          %v1622 = vadd.f32 %v1549, %v1621
          %v1623 = vpop.f32.mrf.mxu0
          %1624 = vdwg.mxu0
          %s1625 = scalar_lea.vmem [#allocation6], 4
          %1626 = vst [vmem:[%s1625] sm:$0x3] %v1622
          %s1627 = scalar_lea.vmem [#allocation2], 768
          %v1628 = vld [vmem:[%s1627] sm:$0xff]
          %v1629 = vld [vmem:[%s1627 + $0x8] sm:$0xff]
          %v1630 = vld [vmem:[%s1627 + $0x10] sm:$0xff]
          %v1631 = vld [vmem:[%s1627 + $0x18] sm:$0xff]
          %v1632 = vld [vmem:[%s1627 + $0x20] sm:$0xff]
          %v1633 = vld [vmem:[%s1627 + $0x28] sm:$0xff]
          %v1634 = vld [vmem:[%s1627 + $0x30] sm:$0xff]
          %v1635 = vld [vmem:[%s1627 + $0x38] sm:$0xff]
          %v1636 = vld [vmem:[%s1627 + $0x40] sm:$0xff]
          %v1637 = vld [vmem:[%s1627 + $0x48] sm:$0xff]
          %v1638 = vld [vmem:[%s1627 + $0x50] sm:$0xff]
          %v1639 = vld [vmem:[%s1627 + $0x58] sm:$0xff]
          %v1640 = vld [vmem:[%s1627 + $0x60] sm:$0xff]
          %v1641 = vld [vmem:[%s1627 + $0x68] sm:$0xff]
          %v1642 = vld [vmem:[%s1627 + $0x70] sm:$0xff]
          %v1643 = vld [vmem:[%s1627 + $0x78] sm:$0xff]
          %v1644 = vld [vmem:[%s1627 + $0x80] sm:$0xff]
          %v1645 = vld [vmem:[%s1627 + $0x88] sm:$0xff]
          %v1646 = vld [vmem:[%s1627 + $0x90] sm:$0xff]
          %v1647 = vld [vmem:[%s1627 + $0x98] sm:$0xff]
          %v1648 = vld [vmem:[%s1627 + $0xa0] sm:$0xff]
          %v1649 = vld [vmem:[%s1627 + $0xa8] sm:$0xff]
          %v1650 = vld [vmem:[%s1627 + $0xb0] sm:$0xff]
          %v1651 = vld [vmem:[%s1627 + $0xb8] sm:$0xff]
          %v1652 = vld [vmem:[%s1627 + $0xc0] sm:$0xff]
          %v1653 = vld [vmem:[%s1627 + $0xc8] sm:$0xff]
          %v1654 = vld [vmem:[%s1627 + $0xd0] sm:$0xff]
          %v1655 = vld [vmem:[%s1627 + $0xd8] sm:$0xff]
          %v1656 = vld [vmem:[%s1627 + $0xe0] sm:$0xff]
          %v1657 = vld [vmem:[%s1627 + $0xe8] sm:$0xff]
          %v1658 = vld [vmem:[%s1627 + $0xf0] sm:$0xff]
          %v1659 = vld [vmem:[%s1627 + $0xf8] sm:$0xff]
          %s1660 = scalar_lea.vmem %s7, 3
          %v1661 = vld [vmem:[%s1660] sm:$0x1]
          %v1663 = vlaneseq
          %v1664 = vshrl.u32 %v1663, 7
          %v1665 = vsub.s32 0, %v1664
          %v1666 = vrot.slane %v1661, %v1665
          %v1668 = vrot.slane %v1277, 6
          %v1669 = vrot.slane %v1278, 6
          %1672 = vmatprep.subr.mxu0 0.0
          %1673 = vmatpush1.msra.mxu0 %v1643
          %1674 = vmatprep.subr.mxu0 0.0
          %1675 = vmatpush1.msra.mxu0 %v1642
          %1676 = vmatprep.subr.mxu0 0.0
          %1677 = vmatpush1.msra.mxu0 %v1641
          %1678 = vmatprep.subr.mxu0 0.0
          %1679 = vmatpush1.msra.mxu0 %v1640
          %1680 = vmatprep.subr.mxu0 0.0
          %1681 = vmatpush1.msra.mxu0 %v1639
          %1682 = vmatprep.subr.mxu0 0.0
          %1683 = vmatpush1.msra.mxu0 %v1638
          %1684 = vmatprep.subr.mxu0 0.0
          %1685 = vmatpush1.msra.mxu0 %v1637
          %1686 = vmatprep.subr.mxu0 0.0
          %1687 = vmatpush1.msra.mxu0 %v1636
          %1688 = vmatprep.subr.mxu0 0.0
          %1689 = vmatpush1.msra.mxu0 %v1635
          %1690 = vmatprep.subr.mxu0 0.0
          %1691 = vmatpush1.msra.mxu0 %v1634
          %1692 = vmatprep.subr.mxu0 0.0
          %1693 = vmatpush1.msra.mxu0 %v1633
          %1694 = vmatprep.subr.mxu0 0.0
          %1695 = vmatpush1.msra.mxu0 %v1632
          %1696 = vmatprep.subr.mxu0 0.0
          %1697 = vmatpush1.msra.mxu0 %v1631
          %1698 = vmatprep.subr.mxu0 0.0
          %1699 = vmatpush1.msra.mxu0 %v1630
          %1700 = vmatprep.subr.mxu0 0.0
          %1701 = vmatpush1.msra.mxu0 %v1629
          %1702 = vmatprep.subr.mxu0 0.0
          %1703 = vmatpush1.msra.mxu0 %v1628
          %1704 = vmatprep.subr.mxu0 0.0
          %1705 = vmatpush2.msra.mxu0 %v1659
          %1706 = vmatprep.subr.mxu0 0.0
          %1707 = vmatpush2.msra.mxu0 %v1658
          %1708 = vmatprep.subr.mxu0 0.0
          %1709 = vmatpush2.msra.mxu0 %v1657
          %1710 = vmatprep.subr.mxu0 0.0
          %1711 = vmatpush2.msra.mxu0 %v1656
          %1712 = vmatprep.subr.mxu0 0.0
          %1713 = vmatpush2.msra.mxu0 %v1655
          %1714 = vmatprep.subr.mxu0 0.0
          %1715 = vmatpush2.msra.mxu0 %v1654
          %1716 = vmatprep.subr.mxu0 0.0
          %1717 = vmatpush2.msra.mxu0 %v1653
          %1718 = vmatprep.subr.mxu0 0.0
          %1719 = vmatpush2.msra.mxu0 %v1652
          %1720 = vmatprep.subr.mxu0 0.0
          %1721 = vmatpush2.msra.mxu0 %v1651
          %1722 = vmatprep.subr.mxu0 0.0
          %1723 = vmatpush2.msra.mxu0 %v1650
          %1724 = vmatprep.subr.mxu0 0.0
          %1725 = vmatpush2.msra.mxu0 %v1649
          %1726 = vmatprep.subr.mxu0 0.0
          %1727 = vmatpush2.msra.mxu0 %v1648
          %1728 = vmatprep.subr.mxu0 0.0
          %1729 = vmatpush2.msra.mxu0 %v1647
          %1730 = vmatprep.subr.mxu0 0.0
          %1731 = vmatpush2.msra.mxu0 %v1646
          %1732 = vmatprep.subr.mxu0 0.0
          %1733 = vmatpush2.msra.mxu0 %v1645
          %1734 = vmatprep.subr.mxu0 0.0
          %1735 = vmatpush2.msra.mxu0 %v1644
          %1736 = vmatprep.mubr.f32.mxu0 %v1669
          %1737 = vmatmul.mubr.f32.gmra.mxu0 %v1668
          %v1738 = vpop.f32.mrf.mxu0
          %v1739 = vadd.f32 %v1666, %v1738
          %v1740 = vpop.f32.mrf.mxu0
          %1741 = vdwg.mxu0
          %s1742 = scalar_lea.vmem [#allocation6], 6
          %1743 = vst [vmem:[%s1742] sm:$0x3] %v1739
          %s1744 = scalar_lea.vmem [#allocation2], 1024
          %v1745 = vld [vmem:[%s1744] sm:$0xff]
          %v1746 = vld [vmem:[%s1744 + $0x8] sm:$0xff]
          %v1747 = vld [vmem:[%s1744 + $0x10] sm:$0xff]
          %v1748 = vld [vmem:[%s1744 + $0x18] sm:$0xff]
          %v1749 = vld [vmem:[%s1744 + $0x20] sm:$0xff]
          %v1750 = vld [vmem:[%s1744 + $0x28] sm:$0xff]
          %v1751 = vld [vmem:[%s1744 + $0x30] sm:$0xff]
          %v1752 = vld [vmem:[%s1744 + $0x38] sm:$0xff]
          %v1753 = vld [vmem:[%s1744 + $0x40] sm:$0xff]
          %v1754 = vld [vmem:[%s1744 + $0x48] sm:$0xff]
          %v1755 = vld [vmem:[%s1744 + $0x50] sm:$0xff]
          %v1756 = vld [vmem:[%s1744 + $0x58] sm:$0xff]
          %v1757 = vld [vmem:[%s1744 + $0x60] sm:$0xff]
          %v1758 = vld [vmem:[%s1744 + $0x68] sm:$0xff]
          %v1759 = vld [vmem:[%s1744 + $0x70] sm:$0xff]
          %v1760 = vld [vmem:[%s1744 + $0x78] sm:$0xff]
          %v1761 = vld [vmem:[%s1744 + $0x80] sm:$0xff]
          %v1762 = vld [vmem:[%s1744 + $0x88] sm:$0xff]
          %v1763 = vld [vmem:[%s1744 + $0x90] sm:$0xff]
          %v1764 = vld [vmem:[%s1744 + $0x98] sm:$0xff]
          %v1765 = vld [vmem:[%s1744 + $0xa0] sm:$0xff]
          %v1766 = vld [vmem:[%s1744 + $0xa8] sm:$0xff]
          %v1767 = vld [vmem:[%s1744 + $0xb0] sm:$0xff]
          %v1768 = vld [vmem:[%s1744 + $0xb8] sm:$0xff]
          %v1769 = vld [vmem:[%s1744 + $0xc0] sm:$0xff]
          %v1770 = vld [vmem:[%s1744 + $0xc8] sm:$0xff]
          %v1771 = vld [vmem:[%s1744 + $0xd0] sm:$0xff]
          %v1772 = vld [vmem:[%s1744 + $0xd8] sm:$0xff]
          %v1773 = vld [vmem:[%s1744 + $0xe0] sm:$0xff]
          %v1774 = vld [vmem:[%s1744 + $0xe8] sm:$0xff]
          %v1775 = vld [vmem:[%s1744 + $0xf0] sm:$0xff]
          %v1776 = vld [vmem:[%s1744 + $0xf8] sm:$0xff]
          %s1777 = scalar_lea.vmem %s7, 4
          %v1778 = vld [vmem:[%s1777] sm:$0x1]
          %v1780 = vlaneseq
          %v1781 = vshrl.u32 %v1780, 7
          %v1782 = vsub.s32 0, %v1781
          %v1783 = vrot.slane %v1778, %v1782
          %1785 = vmatprep.subr.mxu0 0.0
          %1786 = vmatpush1.msra.mxu0 %v1760
          %1787 = vmatprep.subr.mxu0 0.0
          %1788 = vmatpush1.msra.mxu0 %v1759
          %1789 = vmatprep.subr.mxu0 0.0
          %1790 = vmatpush1.msra.mxu0 %v1758
          %1791 = vmatprep.subr.mxu0 0.0
          %1792 = vmatpush1.msra.mxu0 %v1757
          %1793 = vmatprep.subr.mxu0 0.0
          %1794 = vmatpush1.msra.mxu0 %v1756
          %1795 = vmatprep.subr.mxu0 0.0
          %1796 = vmatpush1.msra.mxu0 %v1755
          %1797 = vmatprep.subr.mxu0 0.0
          %1798 = vmatpush1.msra.mxu0 %v1754
          %1799 = vmatprep.subr.mxu0 0.0
          %1800 = vmatpush1.msra.mxu0 %v1753
          %1801 = vmatprep.subr.mxu0 0.0
          %1802 = vmatpush1.msra.mxu0 %v1752
          %1803 = vmatprep.subr.mxu0 0.0
          %1804 = vmatpush1.msra.mxu0 %v1751
          %1805 = vmatprep.subr.mxu0 0.0
          %1806 = vmatpush1.msra.mxu0 %v1750
          %1807 = vmatprep.subr.mxu0 0.0
          %1808 = vmatpush1.msra.mxu0 %v1749
          %1809 = vmatprep.subr.mxu0 0.0
          %1810 = vmatpush1.msra.mxu0 %v1748
          %1811 = vmatprep.subr.mxu0 0.0
          %1812 = vmatpush1.msra.mxu0 %v1747
          %1813 = vmatprep.subr.mxu0 0.0
          %1814 = vmatpush1.msra.mxu0 %v1746
          %1815 = vmatprep.subr.mxu0 0.0
          %1816 = vmatpush1.msra.mxu0 %v1745
          %1817 = vmatprep.subr.mxu0 0.0
          %1818 = vmatpush2.msra.mxu0 %v1776
          %1819 = vmatprep.subr.mxu0 0.0
          %1820 = vmatpush2.msra.mxu0 %v1775
          %1821 = vmatprep.subr.mxu0 0.0
          %1822 = vmatpush2.msra.mxu0 %v1774
          %1823 = vmatprep.subr.mxu0 0.0
          %1824 = vmatpush2.msra.mxu0 %v1773
          %1825 = vmatprep.subr.mxu0 0.0
          %1826 = vmatpush2.msra.mxu0 %v1772
          %1827 = vmatprep.subr.mxu0 0.0
          %1828 = vmatpush2.msra.mxu0 %v1771
          %1829 = vmatprep.subr.mxu0 0.0
          %1830 = vmatpush2.msra.mxu0 %v1770
          %1831 = vmatprep.subr.mxu0 0.0
          %1832 = vmatpush2.msra.mxu0 %v1769
          %1833 = vmatprep.subr.mxu0 0.0
          %1834 = vmatpush2.msra.mxu0 %v1768
          %1835 = vmatprep.subr.mxu0 0.0
          %1836 = vmatpush2.msra.mxu0 %v1767
          %1837 = vmatprep.subr.mxu0 0.0
          %1838 = vmatpush2.msra.mxu0 %v1766
          %1839 = vmatprep.subr.mxu0 0.0
          %1840 = vmatpush2.msra.mxu0 %v1765
          %1841 = vmatprep.subr.mxu0 0.0
          %1842 = vmatpush2.msra.mxu0 %v1764
          %1843 = vmatprep.subr.mxu0 0.0
          %1844 = vmatpush2.msra.mxu0 %v1763
          %1845 = vmatprep.subr.mxu0 0.0
          %1846 = vmatpush2.msra.mxu0 %v1762
          %1847 = vmatprep.subr.mxu0 0.0
          %1848 = vmatpush2.msra.mxu0 %v1761
          %1849 = vmatprep.mubr.f32.mxu0 %v1280
          %1850 = vmatmul.mubr.f32.gmra.mxu0 %v1279
          %v1851 = vpop.f32.mrf.mxu0
          %v1852 = vadd.f32 %v1783, %v1851
          %v1853 = vpop.f32.mrf.mxu0
          %1854 = vdwg.mxu0
          %s1855 = scalar_lea.vmem [#allocation6], 8
          %1856 = vst [vmem:[%s1855] sm:$0x3] %v1852
          %s1857 = scalar_lea.vmem [#allocation2], 1280
          %v1858 = vld [vmem:[%s1857] sm:$0xff]
          %v1859 = vld [vmem:[%s1857 + $0x8] sm:$0xff]
          %v1860 = vld [vmem:[%s1857 + $0x10] sm:$0xff]
          %v1861 = vld [vmem:[%s1857 + $0x18] sm:$0xff]
          %v1862 = vld [vmem:[%s1857 + $0x20] sm:$0xff]
          %v1863 = vld [vmem:[%s1857 + $0x28] sm:$0xff]
          %v1864 = vld [vmem:[%s1857 + $0x30] sm:$0xff]
          %v1865 = vld [vmem:[%s1857 + $0x38] sm:$0xff]
          %v1866 = vld [vmem:[%s1857 + $0x40] sm:$0xff]
          %v1867 = vld [vmem:[%s1857 + $0x48] sm:$0xff]
          %v1868 = vld [vmem:[%s1857 + $0x50] sm:$0xff]
          %v1869 = vld [vmem:[%s1857 + $0x58] sm:$0xff]
          %v1870 = vld [vmem:[%s1857 + $0x60] sm:$0xff]
          %v1871 = vld [vmem:[%s1857 + $0x68] sm:$0xff]
          %v1872 = vld [vmem:[%s1857 + $0x70] sm:$0xff]
          %v1873 = vld [vmem:[%s1857 + $0x78] sm:$0xff]
          %v1874 = vld [vmem:[%s1857 + $0x80] sm:$0xff]
          %v1875 = vld [vmem:[%s1857 + $0x88] sm:$0xff]
          %v1876 = vld [vmem:[%s1857 + $0x90] sm:$0xff]
          %v1877 = vld [vmem:[%s1857 + $0x98] sm:$0xff]
          %v1878 = vld [vmem:[%s1857 + $0xa0] sm:$0xff]
          %v1879 = vld [vmem:[%s1857 + $0xa8] sm:$0xff]
          %v1880 = vld [vmem:[%s1857 + $0xb0] sm:$0xff]
          %v1881 = vld [vmem:[%s1857 + $0xb8] sm:$0xff]
          %v1882 = vld [vmem:[%s1857 + $0xc0] sm:$0xff]
          %v1883 = vld [vmem:[%s1857 + $0xc8] sm:$0xff]
          %v1884 = vld [vmem:[%s1857 + $0xd0] sm:$0xff]
          %v1885 = vld [vmem:[%s1857 + $0xd8] sm:$0xff]
          %v1886 = vld [vmem:[%s1857 + $0xe0] sm:$0xff]
          %v1887 = vld [vmem:[%s1857 + $0xe8] sm:$0xff]
          %v1888 = vld [vmem:[%s1857 + $0xf0] sm:$0xff]
          %v1889 = vld [vmem:[%s1857 + $0xf8] sm:$0xff]
          %s1890 = scalar_lea.vmem %s7, 5
          %v1891 = vld [vmem:[%s1890] sm:$0x1]
          %v1893 = vlaneseq
          %v1894 = vshrl.u32 %v1893, 7
          %v1895 = vsub.s32 0, %v1894
          %v1896 = vrot.slane %v1891, %v1895
          %v1900 = vrot.slane %v1279, 2
          %v1901 = vrot.slane %v1280, 2
          %1904 = vmatprep.subr.mxu0 0.0
          %1905 = vmatpush1.msra.mxu0 %v1873
          %1906 = vmatprep.subr.mxu0 0.0
          %1907 = vmatpush1.msra.mxu0 %v1872
          %1908 = vmatprep.subr.mxu0 0.0
          %1909 = vmatpush1.msra.mxu0 %v1871
          %1910 = vmatprep.subr.mxu0 0.0
          %1911 = vmatpush1.msra.mxu0 %v1870
          %1912 = vmatprep.subr.mxu0 0.0
          %1913 = vmatpush1.msra.mxu0 %v1869
          %1914 = vmatprep.subr.mxu0 0.0
          %1915 = vmatpush1.msra.mxu0 %v1868
          %1916 = vmatprep.subr.mxu0 0.0
          %1917 = vmatpush1.msra.mxu0 %v1867
          %1918 = vmatprep.subr.mxu0 0.0
          %1919 = vmatpush1.msra.mxu0 %v1866
          %1920 = vmatprep.subr.mxu0 0.0
          %1921 = vmatpush1.msra.mxu0 %v1865
          %1922 = vmatprep.subr.mxu0 0.0
          %1923 = vmatpush1.msra.mxu0 %v1864
          %1924 = vmatprep.subr.mxu0 0.0
          %1925 = vmatpush1.msra.mxu0 %v1863
          %1926 = vmatprep.subr.mxu0 0.0
          %1927 = vmatpush1.msra.mxu0 %v1862
          %1928 = vmatprep.subr.mxu0 0.0
          %1929 = vmatpush1.msra.mxu0 %v1861
          %1930 = vmatprep.subr.mxu0 0.0
          %1931 = vmatpush1.msra.mxu0 %v1860
          %1932 = vmatprep.subr.mxu0 0.0
          %1933 = vmatpush1.msra.mxu0 %v1859
          %1934 = vmatprep.subr.mxu0 0.0
          %1935 = vmatpush1.msra.mxu0 %v1858
          %1936 = vmatprep.subr.mxu0 0.0
          %1937 = vmatpush2.msra.mxu0 %v1889
          %1938 = vmatprep.subr.mxu0 0.0
          %1939 = vmatpush2.msra.mxu0 %v1888
          %1940 = vmatprep.subr.mxu0 0.0
          %1941 = vmatpush2.msra.mxu0 %v1887
          %1942 = vmatprep.subr.mxu0 0.0
          %1943 = vmatpush2.msra.mxu0 %v1886
          %1944 = vmatprep.subr.mxu0 0.0
          %1945 = vmatpush2.msra.mxu0 %v1885
          %1946 = vmatprep.subr.mxu0 0.0
          %1947 = vmatpush2.msra.mxu0 %v1884
          %1948 = vmatprep.subr.mxu0 0.0
          %1949 = vmatpush2.msra.mxu0 %v1883
          %1950 = vmatprep.subr.mxu0 0.0
          %1951 = vmatpush2.msra.mxu0 %v1882
          %1952 = vmatprep.subr.mxu0 0.0
          %1953 = vmatpush2.msra.mxu0 %v1881
          %1954 = vmatprep.subr.mxu0 0.0
          %1955 = vmatpush2.msra.mxu0 %v1880
          %1956 = vmatprep.subr.mxu0 0.0
          %1957 = vmatpush2.msra.mxu0 %v1879
          %1958 = vmatprep.subr.mxu0 0.0
          %1959 = vmatpush2.msra.mxu0 %v1878
          %1960 = vmatprep.subr.mxu0 0.0
          %1961 = vmatpush2.msra.mxu0 %v1877
          %1962 = vmatprep.subr.mxu0 0.0
          %1963 = vmatpush2.msra.mxu0 %v1876
          %1964 = vmatprep.subr.mxu0 0.0
          %1965 = vmatpush2.msra.mxu0 %v1875
          %1966 = vmatprep.subr.mxu0 0.0
          %1967 = vmatpush2.msra.mxu0 %v1874
          %1968 = vmatprep.mubr.f32.mxu0 %v1901
          %1969 = vmatmul.mubr.f32.gmra.mxu0 %v1900
          %v1970 = vpop.f32.mrf.mxu0
          %v1971 = vadd.f32 %v1896, %v1970
          %v1972 = vpop.f32.mrf.mxu0
          %1973 = vdwg.mxu0
          %s1974 = scalar_lea.vmem [#allocation6], 10
          %1975 = vst [vmem:[%s1974] sm:$0x3] %v1971
        $region60: #{tpu_custom_call.1} parent=51 // pred_fallthru
          _
        // Predicated region
        $region61: #{tpu_custom_call.1} parent=51 // pred_check
          %p1976 = pneg %p210
        $region62: #{tpu_custom_call.1} parent=51 // pred_check_branch
          %1978 = sbr.rel (%p1976) target = $region64
        $region63: #{tpu_custom_call.1} parent=51 // pred_region
          %s1980 = ssub.s32 1024, 1024
          %1981 = vsyncadd [#allocation4], %s1980
          %s1982 = sshll.u32 [#allocation5], 4
          %s1983 = int_to_ptr.vmem [resolvable:$true] %s1982
          %1988 = dma.vmem_to_hbm [thread:$0]  %s1983, 1024, %s8, [#allocation4], 512, 512, 32
        $region64: #{tpu_custom_call.1} parent=51 // pred_fallthru
          _
        // Predicated region
        $region65: #{tpu_custom_call.1} parent=51 // pred_check
          %p1989 = pneg %p231
        $region66: #{tpu_custom_call.1} parent=51 // pred_check_branch
          %1991 = sbr.rel (%p1989) target = $region68
        $region67: #{tpu_custom_call.1} parent=51 // pred_region
          %s1993 = ssub.s32 192, 192
          %1994 = vsyncadd [#allocation7], %s1993
          %s1995 = sshll.u32 [#allocation6], 4
          %s1996 = int_to_ptr.vmem [resolvable:$true] %s1995
          %2001 = dma.vmem_to_hbm [thread:$0]  %s1996, 192, %s9, [#allocation7], 32, 32, 2
        $region68: #{tpu_custom_call.1} parent=51 // pred_fallthru
          _
        // Predicated region
        $region69: #{tpu_custom_call.1} parent=51 // pred_check
          %p2002 = pneg %p210
        $region70: #{tpu_custom_call.1} parent=51 // pred_check_branch
          %2004 = sbr.rel (%p2002) target = $region72
        $region71: #{tpu_custom_call.1} parent=51 // pred_region
          %2005 = dma.done [#allocation4], 1024
        $region72: #{tpu_custom_call.1} parent=51 // pred_fallthru
          _
        // Predicated region
        $region73: #{tpu_custom_call.1} parent=51 // pred_check
          %p2006 = pneg %p231
        $region74: #{tpu_custom_call.1} parent=51 // pred_check_branch
          %2008 = sbr.rel (%p2006) target = $region76
        $region75: #{tpu_custom_call.1} parent=51 // pred_region
          %2009 = dma.done [#allocation7], 192
        $region76: #{tpu_custom_call.1} parent=51 // pred_fallthru
          _
      $region52: #{tpu_custom_call.1} parent=5 // pred_fallthru
        _
      %p2010 = scmp.le.s32.totalorder 2, %s19
      // Predicated region
      $region77: #{tpu_custom_call.1} parent=5 // pred_check
        %p2011 = pneg %p2010
      $region78: #{tpu_custom_call.1} parent=5 // pred_check_branch
        %2013 = sbr.rel (%p2011) target = $region80
      $region79: #{tpu_custom_call.1} parent=5 // pred_region
        %s2014 = ssub.s32 %s19, 2
      $region80: #{tpu_custom_call.1} parent=5 // pred_fallthru
        _
    $region6: #{tpu_custom_call.1} parent=1 // loop_footer
      %s23 = sadd.s32 1, %s19
    $region7: #{tpu_custom_call.1} parent=1 // loop_footer_branch
      %18 = sbr.rel target = $region3
    $region8: #{tpu_custom_call.1} parent=1 // loop_exit
      _
    %2015 = vsyncpa [#allocation3], 1
    %s2016 = scalar_lea.sflag [#allocation3], 1
    %2017 = vsyncpa %s2016, 1
    %2018 = vsyncpa [#allocation4], 1
    %s2019 = scalar_lea.sflag [#allocation4], 1
    %2020 = vsyncpa %s2019, 1
    %2021 = vsyncpa [#allocation7], 1

</llo_original>
